<compile_context>
chip_gen: v6e
topology: v6e:2x2x1
jax: 0.10.0
libtpu: 0.0.40
codegen_flags: <defaults>
</compile_context>

<pallas_src>
import functools

import jax
import jax.numpy as jnp
from jax.experimental import pallas as pl
from jax.experimental.pallas import tpu as pltpu

SUBLANE = 8
LANE = 128
_MIB = 1 << 20


def _round_up(x, m):
    return ((x + m - 1) // m) * m


def _cdiv(a, b):
    return (a + b - 1) // b


def _pad_to(arr, shape):
    pads = [(0, t - s) for s, t in zip(arr.shape, shape)]
    if all(p == (0, 0) for p in pads):
        return arr
    return jnp.pad(arr, pads)


def mlp_kernel(x_ref, *refs):
    """Fused MLP forward: (Linear -> ReLU) * 3 -> Linear, one grid step per batch tile.

    refs = (w1, b1, w2, b2, w3, b3, w4, b4, out). Matmuls accumulate in f32 on the MXU;
    bias-add / ReLU are f32 on the VPU; activations are cast to the weight dtype (bf16 or
    f32) only as the next matmul operand.
    """
    o_ref = refs[-1]
    wbs = refs[:-1]
    n_layers = len(wbs) // 2

    compute_dtype = wbs[0].dtype
    h = x_ref[...]
    if h.dtype != compute_dtype:          # static at trace time; no-op when x is already bf16
        h = h.astype(compute_dtype)

    for layer in range(n_layers):
        w_ref = wbs[2 * layer]
        b_ref = wbs[2 * layer + 1]
        acc = jnp.dot(h, w_ref[...], preferred_element_type=jnp.float32)
        acc = acc + b_ref[...].astype(jnp.float32)
        if layer < n_layers - 1:
            acc = jnp.maximum(acc, 0.0)
            h = acc.astype(compute_dtype)
        else:
            o_ref[...] = acc.astype(o_ref.dtype)


def prepare_mlp_params(params, weight_dtype=jnp.bfloat16):
    """One-time lane-padding (+ dtype cast) of weights/biases, done at init time.

    params: list of (W [fan_in, fan_out] f32, b [1, fan_out] f32).
    Returns list of (W_padded in weight_dtype, b_padded in f32), feature axes padded to 128.
    Zero-padded units have w=0, b=0 -> 0 after ReLU -> contribute nothing (exact).
    """
    prepared = []
    for (w, b) in params:
        fi, fo = w.shape
        fi_p, fo_p = _round_up(fi, LANE), _round_up(fo, LANE)
        w_p = _pad_to(w, (fi_p, fo_p)).astype(weight_dtype)
        b_p = _pad_to(jnp.asarray(b).reshape(1, -1), (1, fo_p)).astype(jnp.float32)
        prepared.append((w_p, b_p))
    return prepared


@functools.partial(
    jax.jit,
    static_argnames=("out_dim", "block_b", "single_buffer_weights",
                     "out_dtype", "vmem_budget_bytes"))
def mlp_forward(x, prepared, *, out_dim, block_b=2048, single_buffer_weights=True,
                out_dtype=None, vmem_budget_bytes=48 * _MIB):
    """x: [B, in_dim] (f32 or bf16).  prepared: output of prepare_mlp_params.

    block_b: batch tile (sweep 1024-4096); auto-shrunk for VMEM budget / megacore.
    out_dtype: None -> same as x; jnp.bfloat16 halves output writeback.
    """
    B, in_dim = x.shape
    in_p = prepared[0][0].shape[0]          # padded in_dim (>= in_dim)
    out_p = prepared[-1][0].shape[1]        # padded out_dim
    out_dtype = x.dtype if out_dtype is None else out_dtype

    x_bytes = jnp.dtype(x.dtype).itemsize
    out_bytes = jnp.dtype(out_dtype).itemsize
    weight_bytes = sum(w.size * jnp.dtype(w.dtype).itemsize
                       + b.size * jnp.dtype(b.dtype).itemsize
                       for (w, b) in prepared)
    weight_vmem = weight_bytes * (1 if single_buffer_weights else 2)

    # ---- batch tile selection ----
    B_aligned = _round_up(B, SUBLANE)
    bb = max(SUBLANE, min(block_b, B_aligned))
    # v7x: guarantee >= 2 grid steps so the "parallel" axis shards across both
    # TensorCores (harmless on single-TC v5e/v6e).
    if B_aligned >= 2 * SUBLANE and _cdiv(B_aligned, bb) < 2:
        bb = _round_up(_cdiv(B_aligned, 2), SUBLANE)
    bb = _round_up(bb, SUBLANE)

    # Explicit VMEM budget (v7x: 64 MiB/TC, 32 MiB default scoped): double-buffered
    # x/out tiles + resident weights must fit; shrink bb until they do.
    def _tile_vmem(bb_):
        return 2 * bb_ * in_p * x_bytes + 2 * bb_ * out_p * out_bytes + weight_vmem

    while bb > SUBLANE and _tile_vmem(bb) > vmem_budget_bytes:
        bb = max(SUBLANE, _round_up(bb // 2, SUBLANE))

    Bp = _round_up(B_aligned, bb)
    grid = (Bp // bb,)

    x_p = _pad_to(x, (Bp, in_p))            # no-op when already aligned

    def _const_spec(shape):
        # Constant block index: Pallas skips re-DMA across grid steps, weights stay resident.
        if single_buffer_weights:
            return pl.BlockSpec(shape, lambda i: (0,) * len(shape),
                                pipeline_mode=pl.Buffered(1))
        return pl.BlockSpec(shape, lambda i: (0,) * len(shape))

    flat_inputs = [x_p]
    in_specs = [pl.BlockSpec((bb, in_p), lambda i: (i, 0))]
    flops = 0
    for (w_p, b_p) in prepared:
        flat_inputs += [w_p, b_p]
        in_specs += [_const_spec(w_p.shape), _const_spec(b_p.shape)]
        flops += 2 * Bp * w_p.shape[0] * w_p.shape[1]

    bytes_accessed = x_p.size * x_bytes + Bp * out_p * out_bytes + weight_bytes
    vmem_limit = int(min(64 * _MIB, max(_tile_vmem(bb) + 4 * _MIB, 16 * _MIB)))

    out_padded = pl.pallas_call(
        mlp_kernel,
        out_shape=jax.ShapeDtypeStruct((Bp, out_p), out_dtype),
        grid_spec=pltpu.PrefetchScalarGridSpec(
            num_scalar_prefetch=0,
            grid=grid,
            in_specs=in_specs,
            out_specs=pl.BlockSpec((bb, out_p), lambda i: (i, 0)),
        ),
        compiler_params=pltpu.CompilerParams(
            dimension_semantics=("parallel",),        # megacore sharding of the batch grid
            vmem_limit_bytes=vmem_limit,
        ),
        cost_estimate=pl.CostEstimate(
            flops=flops, transcendentals=0, bytes_accessed=bytes_accessed),
    )(*flat_inputs)

    # Strip batch / lane padding (callers must always consume this sliced view).
    return out_padded[:B, :out_dim]


def init_mlp_params(key, in_dim, out_dim, layer_widths=(256, 128, 64)):
    """Deterministic init mirroring torch.nn.Linear default (U(-1/sqrt(fan_in), +))."""
    dims = [in_dim] + list(layer_widths) + [out_dim]
    params = []
    for i in range(len(dims) - 1):
        fan_in, fan_out = dims[i], dims[i + 1]
        key, kw, kb = jax.random.split(key, 3)
        bound = 1.0 / jnp.sqrt(jnp.float32(fan_in))
        W = jax.random.uniform(kw, (fan_in, fan_out), jnp.float32, -bound, bound)
        b = jax.random.uniform(kb, (1, fan_out), jnp.float32, -bound, bound)
        params.append((W, b))
    return params


def mlp_reference(x, params):
    """Pure-JAX reference for correctness checking."""
    h = x
    for i, (W, b) in enumerate(params):
        h = h @ W + b
        if i < len(params) - 1:
            h = jnp.maximum(h, 0.0)
    return h


if __name__ == "__main__":
    key = jax.random.PRNGKey(0)
    k_x, k_p = jax.random.split(key)

    B, in_dim, out_dim = 8, 32, 16
    x = jax.random.normal(k_x, (B, in_dim), jnp.float32)
    params = init_mlp_params(k_p, in_dim, out_dim, layer_widths=(256, 128, 64))
    y_ref = mlp_reference(x, params)

    def run(weight_dtype):
        prepared = prepare_mlp_params(params, weight_dtype=weight_dtype)
        try:
            return jax.block_until_ready(mlp_forward(x, prepared, out_dim=out_dim))
        except Exception:
            # Fallback if single-buffered (pl.Buffered(1)) weight BlockSpecs are
            # rejected by this jax/libtpu version.
            return jax.block_until_ready(
                mlp_forward(x, prepared, out_dim=out_dim, single_buffer_weights=False))

    # f32 parity path (tight tolerance vs the pure-JAX reference).
    y_f32 = run(jnp.float32)
    assert y_f32.shape == (B, out_dim), y_f32.shape
    assert jnp.allclose(y_f32, y_ref, atol=1e-4, rtol=1e-4), \
        float(jnp.max(jnp.abs(y_f32 - y_ref)))

    # Default bf16-operand path (f32 accumulation): MXU fast path on v5e/v6e/v7x.
    # Note: activations are re-cast to bf16 between layers, so error compounds
    # over the 4 layers (hence the looser tolerance vs f32 parity).
    y_bf16 = run(jnp.bfloat16)
    assert y_bf16.shape == (B, out_dim), y_bf16.shape
    assert bool(jnp.all(jnp.isfinite(y_bf16)))
    assert jnp.allclose(y_bf16, y_ref, atol=1e-1, rtol=1e-1), \
        float(jnp.max(jnp.abs(y_bf16 - y_ref)))

    print("KERNEL_OK")
</pallas_src>

<mosaic_0001>
module attributes {stable_mosaic.version = 11 : i64} {
  func.func @mlp_kernel(%arg0: i32, %arg1: memref<8x128xf32, #tpu.memory_space<vmem>>, %arg2: memref<128x256xf32, #tpu.memory_space<vmem>>, %arg3: memref<1x256xf32, #tpu.memory_space<vmem>>, %arg4: memref<256x128xf32, #tpu.memory_space<vmem>>, %arg5: memref<1x128xf32, #tpu.memory_space<vmem>>, %arg6: memref<128x128xf32, #tpu.memory_space<vmem>>, %arg7: memref<1x128xf32, #tpu.memory_space<vmem>>, %arg8: memref<128x128xf32, #tpu.memory_space<vmem>>, %arg9: memref<1x128xf32, #tpu.memory_space<vmem>>, %arg10: memref<8x128xf32, #tpu.memory_space<vmem>>) attributes {dimension_semantics = [#tpu.dimension_semantics<parallel>], iteration_bounds = array<i64: 1>, scalar_prefetch = 0 : i64, scratch_operands = 0 : i64, tpu.core_type = #tpu.core_type<tc>, window_params = [{transform_indices = @transform_0, window_bounds = array<i64: 8, 128>}, {pipeline_mode = #tpu.pipeline_mode<synchronous>, transform_indices = @transform_1, window_bounds = array<i64: 128, 256>}, {pipeline_mode = #tpu.pipeline_mode<synchronous>, transform_indices = @transform_2, window_bounds = array<i64: 1, 256>}, {pipeline_mode = #tpu.pipeline_mode<synchronous>, transform_indices = @transform_3, window_bounds = array<i64: 256, 128>}, {pipeline_mode = #tpu.pipeline_mode<synchronous>, transform_indices = @transform_4, window_bounds = array<i64: 1, 128>}, {pipeline_mode = #tpu.pipeline_mode<synchronous>, transform_indices = @transform_5, window_bounds = array<i64: 128, 128>}, {pipeline_mode = #tpu.pipeline_mode<synchronous>, transform_indices = @transform_6, window_bounds = array<i64: 1, 128>}, {pipeline_mode = #tpu.pipeline_mode<synchronous>, transform_indices = @transform_7, window_bounds = array<i64: 128, 128>}, {pipeline_mode = #tpu.pipeline_mode<synchronous>, transform_indices = @transform_8, window_bounds = array<i64: 1, 128>}, {transform_indices = @transform_9, window_bounds = array<i64: 8, 128>}]} {
    %c0 = arith.constant 0 : index
    %c0_0 = arith.constant 0 : index
    %0 = vector.load %arg1[%c0, %c0_0] : memref<8x128xf32, #tpu.memory_space<vmem>>, vector<8x128xf32>
    %c0_1 = arith.constant 0 : index
    %c0_2 = arith.constant 0 : index
    %1 = vector.load %arg2[%c0_1, %c0_2] : memref<128x256xf32, #tpu.memory_space<vmem>>, vector<128x256xf32>
    %cst = arith.constant dense<0.000000e+00> : vector<8x256xf32>
    %2 = tpu.matmul %0, %1, %cst {dimension_numbers = #tpu.dot_dimension_numbers<[1], [0], [0], [1], [0, 0, 1, 1], [], []>} : vector<8x128xf32>, vector<128x256xf32>, vector<8x256xf32> -> vector<8x256xf32>
    %c0_3 = arith.constant 0 : index
    %c0_4 = arith.constant 0 : index
    %3 = vector.load %arg3[%c0_3, %c0_4] : memref<1x256xf32, #tpu.memory_space<vmem>>, vector<1x256xf32>
    %4 = vector.broadcast %3 : vector<1x256xf32> to vector<8x256xf32>
    %5 = arith.addf %2, %4 : vector<8x256xf32>
    %cst_5 = arith.constant 0.000000e+00 : f32
    %6 = vector.broadcast %cst_5 : f32 to vector<8x256xf32>
    %7 = arith.maximumf %5, %6 : vector<8x256xf32>
    %c0_6 = arith.constant 0 : index
    %c0_7 = arith.constant 0 : index
    %8 = vector.load %arg4[%c0_6, %c0_7] : memref<256x128xf32, #tpu.memory_space<vmem>>, vector<256x128xf32>
    %cst_8 = arith.constant dense<0.000000e+00> : vector<8x128xf32>
    %9 = tpu.matmul %7, %8, %cst_8 {dimension_numbers = #tpu.dot_dimension_numbers<[1], [0], [0], [1], [0, 0, 1, 1], [], []>} : vector<8x256xf32>, vector<256x128xf32>, vector<8x128xf32> -> vector<8x128xf32>
    %c0_9 = arith.constant 0 : index
    %c0_10 = arith.constant 0 : index
    %10 = vector.load %arg5[%c0_9, %c0_10] : memref<1x128xf32, #tpu.memory_space<vmem>>, vector<1x128xf32>
    %11 = vector.broadcast %10 : vector<1x128xf32> to vector<8x128xf32>
    %12 = arith.addf %9, %11 : vector<8x128xf32>
    %cst_11 = arith.constant 0.000000e+00 : f32
    %13 = vector.broadcast %cst_11 : f32 to vector<8x128xf32>
    %14 = arith.maximumf %12, %13 : vector<8x128xf32>
    %c0_12 = arith.constant 0 : index
    %c0_13 = arith.constant 0 : index
    %15 = vector.load %arg6[%c0_12, %c0_13] : memref<128x128xf32, #tpu.memory_space<vmem>>, vector<128x128xf32>
    %cst_14 = arith.constant dense<0.000000e+00> : vector<8x128xf32>
    %16 = tpu.matmul %14, %15, %cst_14 {dimension_numbers = #tpu.dot_dimension_numbers<[1], [0], [0], [1], [0, 0, 1, 1], [], []>} : vector<8x128xf32>, vector<128x128xf32>, vector<8x128xf32> -> vector<8x128xf32>
    %c0_15 = arith.constant 0 : index
    %c0_16 = arith.constant 0 : index
    %17 = vector.load %arg7[%c0_15, %c0_16] : memref<1x128xf32, #tpu.memory_space<vmem>>, vector<1x128xf32>
    %18 = vector.broadcast %17 : vector<1x128xf32> to vector<8x128xf32>
    %19 = arith.addf %16, %18 : vector<8x128xf32>
    %cst_17 = arith.constant 0.000000e+00 : f32
    %20 = vector.broadcast %cst_17 : f32 to vector<8x128xf32>
    %21 = arith.maximumf %19, %20 : vector<8x128xf32>
    %c0_18 = arith.constant 0 : index
    %c0_19 = arith.constant 0 : index
    %22 = vector.load %arg8[%c0_18, %c0_19] : memref<128x128xf32, #tpu.memory_space<vmem>>, vector<128x128xf32>
    %cst_20 = arith.constant dense<0.000000e+00> : vector<8x128xf32>
    %23 = tpu.matmul %21, %22, %cst_20 {dimension_numbers = #tpu.dot_dimension_numbers<[1], [0], [0], [1], [0, 0, 1, 1], [], []>} : vector<8x128xf32>, vector<128x128xf32>, vector<8x128xf32> -> vector<8x128xf32>
    %c0_21 = arith.constant 0 : index
    %c0_22 = arith.constant 0 : index
    %24 = vector.load %arg9[%c0_21, %c0_22] : memref<1x128xf32, #tpu.memory_space<vmem>>, vector<1x128xf32>
    %25 = vector.broadcast %24 : vector<1x128xf32> to vector<8x128xf32>
    %26 = arith.addf %23, %25 : vector<8x128xf32>
    %c0_23 = arith.constant 0 : index
    %c0_24 = arith.constant 0 : index
    %27 = vector.load %arg10[%c0_23, %c0_24] : memref<8x128xf32, #tpu.memory_space<vmem>>, vector<8x128xf32>
    tpu.vector_store %arg10[%c0_23, %c0_24], %26 {strides = array<i32>} : memref<8x128xf32, #tpu.memory_space<vmem>>, vector<8x128xf32>,
    return
  }
  func.func @transform_0(%arg0: i32) -> (i32, i32) {
    %c0_i32 = arith.constant 0 : i32
    %c0_i32_0 = arith.constant 0 : i32
    return %arg0, %c0_i32 : i32, i32
  }
  func.func @transform_1(%arg0: i32) -> (i32, i32) {
    %c0_i32 = arith.constant 0 : i32
    %c0_i32_0 = arith.constant 0 : i32
    %c0_i32_1 = arith.constant 0 : i32
    return %c0_i32, %c0_i32_0 : i32, i32
  }
  func.func @transform_2(%arg0: i32) -> (i32, i32) {
    %c0_i32 = arith.constant 0 : i32
    %c0_i32_0 = arith.constant 0 : i32
    %c0_i32_1 = arith.constant 0 : i32
    return %c0_i32, %c0_i32_0 : i32, i32
  }
  func.func @transform_3(%arg0: i32) -> (i32, i32) {
    %c0_i32 = arith.constant 0 : i32
    %c0_i32_0 = arith.constant 0 : i32
    %c0_i32_1 = arith.constant 0 : i32
    return %c0_i32, %c0_i32_0 : i32, i32
  }
  func.func @transform_4(%arg0: i32) -> (i32, i32) {
    %c0_i32 = arith.constant 0 : i32
    %c0_i32_0 = arith.constant 0 : i32
    %c0_i32_1 = arith.constant 0 : i32
    return %c0_i32, %c0_i32_0 : i32, i32
  }
  func.func @transform_5(%arg0: i32) -> (i32, i32) {
    %c0_i32 = arith.constant 0 : i32
    %c0_i32_0 = arith.constant 0 : i32
    %c0_i32_1 = arith.constant 0 : i32
    return %c0_i32, %c0_i32_0 : i32, i32
  }
  func.func @transform_6(%arg0: i32) -> (i32, i32) {
    %c0_i32 = arith.constant 0 : i32
    %c0_i32_0 = arith.constant 0 : i32
    %c0_i32_1 = arith.constant 0 : i32
    return %c0_i32, %c0_i32_0 : i32, i32
  }
  func.func @transform_7(%arg0: i32) -> (i32, i32) {
    %c0_i32 = arith.constant 0 : i32
    %c0_i32_0 = arith.constant 0 : i32
    %c0_i32_1 = arith.constant 0 : i32
    return %c0_i32, %c0_i32_0 : i32, i32
  }
  func.func @transform_8(%arg0: i32) -> (i32, i32) {
    %c0_i32 = arith.constant 0 : i32
    %c0_i32_0 = arith.constant 0 : i32
    %c0_i32_1 = arith.constant 0 : i32
    return %c0_i32, %c0_i32_0 : i32, i32
  }
  func.func @transform_9(%arg0: i32) -> (i32, i32) {
    %c0_i32 = arith.constant 0 : i32
    %c0_i32_0 = arith.constant 0 : i32
    return %arg0, %c0_i32 : i32, i32
  }
}

module attributes {stable_mosaic.version = 11 : i64} {
  func.func @mlp_kernel(%arg0: i32, %arg1: memref<8x128xf32, #tpu.memory_space<vmem>>, %arg2: memref<128x256xf32, #tpu.memory_space<vmem>>, %arg3: memref<1x256xf32, #tpu.memory_space<vmem>>, %arg4: memref<256x128xf32, #tpu.memory_space<vmem>>, %arg5: memref<1x128xf32, #tpu.memory_space<vmem>>, %arg6: memref<128x128xf32, #tpu.memory_space<vmem>>, %arg7: memref<1x128xf32, #tpu.memory_space<vmem>>, %arg8: memref<128x128xf32, #tpu.memory_space<vmem>>, %arg9: memref<1x128xf32, #tpu.memory_space<vmem>>, %arg10: memref<8x128xf32, #tpu.memory_space<vmem>>) attributes {dimension_semantics = [#tpu.dimension_semantics<parallel>], iteration_bounds = array<i64: 1>, scalar_prefetch = 0 : i64, scratch_operands = 0 : i64, tpu.core_type = #tpu.core_type<tc>, window_params = [{transform_indices = @transform_0, window_bounds = array<i64: 8, 128>}, {pipeline_mode = #tpu.pipeline_mode<synchronous>, transform_indices = @transform_1, window_bounds = array<i64: 128, 256>}, {pipeline_mode = #tpu.pipeline_mode<synchronous>, transform_indices = @transform_2, window_bounds = array<i64: 1, 256>}, {pipeline_mode = #tpu.pipeline_mode<synchronous>, transform_indices = @transform_3, window_bounds = array<i64: 256, 128>}, {pipeline_mode = #tpu.pipeline_mode<synchronous>, transform_indices = @transform_4, window_bounds = array<i64: 1, 128>}, {pipeline_mode = #tpu.pipeline_mode<synchronous>, transform_indices = @transform_5, window_bounds = array<i64: 128, 128>}, {pipeline_mode = #tpu.pipeline_mode<synchronous>, transform_indices = @transform_6, window_bounds = array<i64: 1, 128>}, {pipeline_mode = #tpu.pipeline_mode<synchronous>, transform_indices = @transform_7, window_bounds = array<i64: 128, 128>}, {pipeline_mode = #tpu.pipeline_mode<synchronous>, transform_indices = @transform_8, window_bounds = array<i64: 1, 128>}, {transform_indices = @transform_9, window_bounds = array<i64: 8, 128>}]} {
    %c0 = arith.constant 0 : index
    %c0_0 = arith.constant 0 : index
    %0 = vector.load %arg1[%c0, %c0_0] : memref<8x128xf32, #tpu.memory_space<vmem>>, vector<8x128xf32>
    %c0_1 = arith.constant 0 : index
    %c0_2 = arith.constant 0 : index
    %1 = vector.load %arg2[%c0_1, %c0_2] : memref<128x256xf32, #tpu.memory_space<vmem>>, vector<128x256xf32>
    %cst = arith.constant dense<0.000000e+00> : vector<8x256xf32>
    %2 = tpu.matmul %0, %1, %cst {dimension_numbers = #tpu.dot_dimension_numbers<[1], [0], [0], [1], [0, 0, 1, 1], [], []>} : vector<8x128xf32>, vector<128x256xf32>, vector<8x256xf32> -> vector<8x256xf32>
    %c0_3 = arith.constant 0 : index
    %c0_4 = arith.constant 0 : index
    %3 = vector.load %arg3[%c0_3, %c0_4] : memref<1x256xf32, #tpu.memory_space<vmem>>, vector<1x256xf32>
    %4 = vector.broadcast %3 : vector<1x256xf32> to vector<8x256xf32>
    %5 = arith.addf %2, %4 : vector<8x256xf32>
    %cst_5 = arith.constant 0.000000e+00 : f32
    %6 = vector.broadcast %cst_5 : f32 to vector<8x256xf32>
    %7 = arith.maximumf %5, %6 : vector<8x256xf32>
    %c0_6 = arith.constant 0 : index
    %c0_7 = arith.constant 0 : index
    %8 = vector.load %arg4[%c0_6, %c0_7] : memref<256x128xf32, #tpu.memory_space<vmem>>, vector<256x128xf32>
    %cst_8 = arith.constant dense<0.000000e+00> : vector<8x128xf32>
    %9 = tpu.matmul %7, %8, %cst_8 {dimension_numbers = #tpu.dot_dimension_numbers<[1], [0], [0], [1], [0, 0, 1, 1], [], []>} : vector<8x256xf32>, vector<256x128xf32>, vector<8x128xf32> -> vector<8x128xf32>
    %c0_9 = arith.constant 0 : index
    %c0_10 = arith.constant 0 : index
    %10 = vector.load %arg5[%c0_9, %c0_10] : memref<1x128xf32, #tpu.memory_space<vmem>>, vector<1x128xf32>
    %11 = vector.broadcast %10 : vector<1x128xf32> to vector<8x128xf32>
    %12 = arith.addf %9, %11 : vector<8x128xf32>
    %cst_11 = arith.constant 0.000000e+00 : f32
    %13 = vector.broadcast %cst_11 : f32 to vector<8x128xf32>
    %14 = arith.maximumf %12, %13 : vector<8x128xf32>
    %c0_12 = arith.constant 0 : index
    %c0_13 = arith.constant 0 : index
    %15 = vector.load %arg6[%c0_12, %c0_13] : memref<128x128xf32, #tpu.memory_space<vmem>>, vector<128x128xf32>
    %cst_14 = arith.constant dense<0.000000e+00> : vector<8x128xf32>
    %16 = tpu.matmul %14, %15, %cst_14 {dimension_numbers = #tpu.dot_dimension_numbers<[1], [0], [0], [1], [0, 0, 1, 1], [], []>} : vector<8x128xf32>, vector<128x128xf32>, vector<8x128xf32> -> vector<8x128xf32>
    %c0_15 = arith.constant 0 : index
    %c0_16 = arith.constant 0 : index
    %17 = vector.load %arg7[%c0_15, %c0_16] : memref<1x128xf32, #tpu.memory_space<vmem>>, vector<1x128xf32>
    %18 = vector.broadcast %17 : vector<1x128xf32> to vector<8x128xf32>
    %19 = arith.addf %16, %18 : vector<8x128xf32>
    %cst_17 = arith.constant 0.000000e+00 : f32
    %20 = vector.broadcast %cst_17 : f32 to vector<8x128xf32>
    %21 = arith.maximumf %19, %20 : vector<8x128xf32>
    %c0_18 = arith.constant 0 : index
    %c0_19 = arith.constant 0 : index
    %22 = vector.load %arg8[%c0_18, %c0_19] : memref<128x128xf32, #tpu.memory_space<vmem>>, vector<128x128xf32>
    %cst_20 = arith.constant dense<0.000000e+00> : vector<8x128xf32>
    %23 = tpu.matmul %21, %22, %cst_20 {dimension_numbers = #tpu.dot_dimension_numbers<[1], [0], [0], [1], [0, 0, 1, 1], [], []>} : vector<8x128xf32>, vector<128x128xf32>, vector<8x128xf32> -> vector<8x128xf32>
    %c0_21 = arith.constant 0 : index
    %c0_22 = arith.constant 0 : index
    %24 = vector.load %arg9[%c0_21, %c0_22] : memref<1x128xf32, #tpu.memory_space<vmem>>, vector<1x128xf32>
    %25 = vector.broadcast %24 : vector<1x128xf32> to vector<8x128xf32>
    %26 = arith.addf %23, %25 : vector<8x128xf32>
    %c0_23 = arith.constant 0 : index
    %c0_24 = arith.constant 0 : index
    %27 = vector.load %arg10[%c0_23, %c0_24] : memref<8x128xf32, #tpu.memory_space<vmem>>, vector<8x128xf32>
    tpu.vector_store %arg10[%c0_23, %c0_24], %26 {strides = array<i32>} : memref<8x128xf32, #tpu.memory_space<vmem>>, vector<8x128xf32>,
    return
  }
  func.func @transform_0(%arg0: i32) -> (i32, i32) {
    %c0_i32 = arith.constant 0 : i32
    %c0_i32_0 = arith.constant 0 : i32
    return %arg0, %c0_i32 : i32, i32
  }
  func.func @transform_1(%arg0: i32) -> (i32, i32) {
    %c0_i32 = arith.constant 0 : i32
    %c0_i32_0 = arith.constant 0 : i32
    %c0_i32_1 = arith.constant 0 : i32
    return %c0_i32, %c0_i32_0 : i32, i32
  }
  func.func @transform_2(%arg0: i32) -> (i32, i32) {
    %c0_i32 = arith.constant 0 : i32
    %c0_i32_0 = arith.constant 0 : i32
    %c0_i32_1 = arith.constant 0 : i32
    return %c0_i32, %c0_i32_0 : i32, i32
  }
  func.func @transform_3(%arg0: i32) -> (i32, i32) {
    %c0_i32 = arith.constant 0 : i32
    %c0_i32_0 = arith.constant 0 : i32
    %c0_i32_1 = arith.constant 0 : i32
    return %c0_i32, %c0_i32_0 : i32, i32
  }
  func.func @transform_4(%arg0: i32) -> (i32, i32) {
    %c0_i32 = arith.constant 0 : i32
    %c0_i32_0 = arith.constant 0 : i32
    %c0_i32_1 = arith.constant 0 : i32
    return %c0_i32, %c0_i32_0 : i32, i32
  }
  func.func @transform_5(%arg0: i32) -> (i32, i32) {
    %c0_i32 = arith.constant 0 : i32
    %c0_i32_0 = arith.constant 0 : i32
    %c0_i32_1 = arith.constant 0 : i32
    return %c0_i32, %c0_i32_0 : i32, i32
  }
  func.func @transform_6(%arg0: i32) -> (i32, i32) {
    %c0_i32 = arith.constant 0 : i32
    %c0_i32_0 = arith.constant 0 : i32
    %c0_i32_1 = arith.constant 0 : i32
    return %c0_i32, %c0_i32_0 : i32, i32
  }
  func.func @transform_7(%arg0: i32) -> (i32, i32) {
    %c0_i32 = arith.constant 0 : i32
    %c0_i32_0 = arith.constant 0 : i32
    %c0_i32_1 = arith.constant 0 : i32
    return %c0_i32, %c0_i32_0 : i32, i32
  }
  func.func @transform_8(%arg0: i32) -> (i32, i32) {
    %c0_i32 = arith.constant 0 : i32
    %c0_i32_0 = arith.constant 0 : i32
    %c0_i32_1 = arith.constant 0 : i32
    return %c0_i32, %c0_i32_0 : i32, i32
  }
  func.func @transform_9(%arg0: i32) -> (i32, i32) {
    %c0_i32 = arith.constant 0 : i32
    %c0_i32_0 = arith.constant 0 : i32
    return %arg0, %c0_i32 : i32, i32
  }
}

</mosaic_0001>

<llo_original>
// kernel: mlp_forward.1
$region0: #{mlp_forward.1}
  #allocation0 [shape = 'u32[]', space=smem, size = 0x4, offset = 0x4, fixed_abs, tag = 'smem constant byte address 0x4 - core index']
  #allocation1 [shape = 'u32[144,128]{1,0:T(1,128)}', space=vmem, size = 0x12000, scoped, tag = 'internal scratch']
  %s0 = inlined_call_operand.vmem [shape: f32[8,128], index: 0, kind: input, shape index: {}]
  %s1 = inlined_call_operand.hbm [shape: f32[128,256], index: 1, kind: input, shape index: {}]
  %s2 = inlined_call_operand.vmem [shape: f32[1,256], index: 2, kind: input, shape index: {}]
  %s3 = inlined_call_operand.hbm [shape: f32[256,128], index: 3, kind: input, shape index: {}]
  %s4 = inlined_call_operand.vmem [shape: f32[1,128], index: 4, kind: input, shape index: {}]
  %s5 = inlined_call_operand.hbm [shape: f32[128,128], index: 5, kind: input, shape index: {}]
  %s6 = inlined_call_operand.vmem [shape: f32[1,128], index: 6, kind: input, shape index: {}]
  %s7 = inlined_call_operand.hbm [shape: f32[128,128], index: 7, kind: input, shape index: {}]
  %s8 = inlined_call_operand.vmem [shape: f32[1,128], index: 8, kind: input, shape index: {}]
  %s9 = inlined_call_operand.hbm [shape: f32[8,128], index: 9, kind: output, shape index: {}]
  %s10 = sld [smem:[#allocation0]]
  $region62: #{mlp_forward.1} parent=0
    _
  %s12 = ssub.s32 1, %s10
  %s13 = scalar_select 0, %s12, %s10
  $region1: #{mlp_forward.1} parent=0
    #allocation2 [shape = 'u8[131072]{0}', space=vmem, size = 0x20000, scoped, tag = 'input window, operand 1, single buffered']
    #allocation3 [shape = 's32[1]{0}', space=sflag, size = 0x4, scoped, tag = 'scoped memory for mlp_forward.1']
    #allocation4 [shape = 's32[1]{0}', space=sflag, size = 0x4, scoped, tag = 'scoped memory for mlp_forward.1']
    #allocation5 [shape = 'u8[131072]{0}', space=vmem, size = 0x20000, scoped, tag = 'input window, operand 3, single buffered']
    #allocation6 [shape = 's32[1]{0}', space=sflag, size = 0x4, scoped, tag = 'scoped memory for mlp_forward.1']
    #allocation7 [shape = 'u8[65536]{0}', space=vmem, size = 0x10000, scoped, tag = 'input window, operand 5, single buffered']
    #allocation8 [shape = 'u8[65536]{0}', space=vmem, size = 0x10000, scoped, tag = 'input window, operand 7, single buffered']
    #allocation9 [shape = 's32[1]{0}', space=sflag, size = 0x4, scoped, tag = 'scoped memory for mlp_forward.1']
    #allocation10 [shape = 'u8[4096]{0}', space=vmem, size = 0x1000, scoped, tag = 'output window, operand 0, single buffered']
    %14 = vsyncpa [#allocation3], 0
    %15 = vsyncpa [#allocation6], 0
    %16 = vsyncpa [#allocation9], 0
    %17 = vsyncpa [#allocation4], 0
    // Predicated region
    $region2: #{mlp_forward.1} parent=1 // pred_check
      _
    $region3: #{mlp_forward.1} parent=1 // pred_check_branch
      %19 = sbr.rel (0) target = $region5
    $region4: #{mlp_forward.1} parent=1 // pred_region
      _
    $region5: #{mlp_forward.1} parent=1 // pred_fallthru
      _
    // Predicated region
    $region6: #{mlp_forward.1} parent=1 // pred_check
      _
    $region7: #{mlp_forward.1} parent=1 // pred_check_branch
      %21 = sbr.rel (0) target = $region9
    $region8: #{mlp_forward.1} parent=1 // pred_region
      %s23 = ssub.s32 4096, 4096
      %24 = vsyncadd [#allocation3], %s23
      %s25 = sshll.u32 [#allocation2], 4
      %s26 = int_to_ptr.vmem [resolvable:$true] %s25
      %31 = dma.hbm_to_vmem [thread:$0]  %s1, 4096, %s26, [#allocation3], 256, 256, 16
    $region9: #{mlp_forward.1} parent=1 // pred_fallthru
      _
    // Predicated region
    $region10: #{mlp_forward.1} parent=1 // pred_check
      _
    $region11: #{mlp_forward.1} parent=1 // pred_check_branch
      %33 = sbr.rel (0) target = $region13
    $region12: #{mlp_forward.1} parent=1 // pred_region
      _
    $region13: #{mlp_forward.1} parent=1 // pred_fallthru
      _
    // Predicated region
    $region14: #{mlp_forward.1} parent=1 // pred_check
      _
    $region15: #{mlp_forward.1} parent=1 // pred_check_branch
      %35 = sbr.rel (0) target = $region17
    $region16: #{mlp_forward.1} parent=1 // pred_region
      %s37 = ssub.s32 4096, 4096
      %38 = vsyncadd [#allocation6], %s37
      %s39 = sshll.u32 [#allocation5], 4
      %s40 = int_to_ptr.vmem [resolvable:$true] %s39
      %45 = dma.hbm_to_vmem [thread:$0]  %s3, 4096, %s40, [#allocation6], 128, 128, 8
    $region17: #{mlp_forward.1} parent=1 // pred_fallthru
      _
    // Predicated region
    $region18: #{mlp_forward.1} parent=1 // pred_check
      _
    $region19: #{mlp_forward.1} parent=1 // pred_check_branch
      %47 = sbr.rel (0) target = $region21
    $region20: #{mlp_forward.1} parent=1 // pred_region
      _
    $region21: #{mlp_forward.1} parent=1 // pred_fallthru
      _
    // Predicated region
    $region22: #{mlp_forward.1} parent=1 // pred_check
      _
    $region23: #{mlp_forward.1} parent=1 // pred_check_branch
      %49 = sbr.rel (0) target = $region25
    $region24: #{mlp_forward.1} parent=1 // pred_region
      %s51 = ssub.s32 2048, 2048
      %52 = vsyncadd [#allocation6], %s51
      %s53 = sshll.u32 [#allocation7], 4
      %s54 = int_to_ptr.vmem [resolvable:$true] %s53
      %59 = dma.hbm_to_vmem [thread:$0]  %s5, 2048, %s54, [#allocation6], 128, 128, 8
    $region25: #{mlp_forward.1} parent=1 // pred_fallthru
      _
    // Predicated region
    $region26: #{mlp_forward.1} parent=1 // pred_check
      _
    $region27: #{mlp_forward.1} parent=1 // pred_check_branch
      %61 = sbr.rel (0) target = $region29
    $region28: #{mlp_forward.1} parent=1 // pred_region
      _
    $region29: #{mlp_forward.1} parent=1 // pred_fallthru
      _
    // Predicated region
    $region30: #{mlp_forward.1} parent=1 // pred_check
      _
    $region31: #{mlp_forward.1} parent=1 // pred_check_branch
      %63 = sbr.rel (0) target = $region33
    $region32: #{mlp_forward.1} parent=1 // pred_region
      %s65 = ssub.s32 2048, 2048
      %66 = vsyncadd [#allocation9], %s65
      %s67 = sshll.u32 [#allocation8], 4
      %s68 = int_to_ptr.vmem [resolvable:$true] %s67
      %73 = dma.hbm_to_vmem [thread:$0]  %s7, 2048, %s68, [#allocation9], 128, 128, 8
    $region33: #{mlp_forward.1} parent=1 // pred_fallthru
      _
    // Predicated region
    $region34: #{mlp_forward.1} parent=1 // pred_check
      _
    $region35: #{mlp_forward.1} parent=1 // pred_check_branch
      %75 = sbr.rel (0) target = $region37
    $region36: #{mlp_forward.1} parent=1 // pred_region
      _
    $region37: #{mlp_forward.1} parent=1 // pred_fallthru
      _
    // Predicated region
    $region38: #{mlp_forward.1} parent=1 // pred_check
      _
    $region39: #{mlp_forward.1} parent=1 // pred_check_branch
      %77 = sbr.rel (0) target = $region41
    $region40: #{mlp_forward.1} parent=1 // pred_region
      %78 = dma.done [#allocation3], 4096
    $region41: #{mlp_forward.1} parent=1 // pred_fallthru
      _
    // Predicated region
    $region42: #{mlp_forward.1} parent=1 // pred_check
      _
    $region43: #{mlp_forward.1} parent=1 // pred_check_branch
      %80 = sbr.rel (0) target = $region45
    $region44: #{mlp_forward.1} parent=1 // pred_region
      %81 = dma.done [#allocation6], 4096
    $region45: #{mlp_forward.1} parent=1 // pred_fallthru
      _
    // Predicated region
    $region46: #{mlp_forward.1} parent=1 // pred_check
      _
    $region47: #{mlp_forward.1} parent=1 // pred_check_branch
      %83 = sbr.rel (0) target = $region49
    $region48: #{mlp_forward.1} parent=1 // pred_region
      %84 = dma.done [#allocation6], 2048
    $region49: #{mlp_forward.1} parent=1 // pred_fallthru
      _
    // Predicated region
    $region50: #{mlp_forward.1} parent=1 // pred_check
      _
    $region51: #{mlp_forward.1} parent=1 // pred_check_branch
      %86 = sbr.rel (0) target = $region53
    $region52: #{mlp_forward.1} parent=1 // pred_region
      %87 = dma.done [#allocation9], 2048
    $region53: #{mlp_forward.1} parent=1 // pred_fallthru
      _
    %v88 = vld [vmem:[%s0] sm:$0xff]
    %v89 = vld [vmem:[#allocation2] sm:$0xff]
    %v90 = vld [vmem:[#allocation2 + $0x8] sm:$0xff]
    %v91 = vld [vmem:[#allocation2 + $0x10] sm:$0xff]
    %v92 = vld [vmem:[#allocation2 + $0x18] sm:$0xff]
    %v93 = vld [vmem:[#allocation2 + $0x20] sm:$0xff]
    %v94 = vld [vmem:[#allocation2 + $0x28] sm:$0xff]
    %v95 = vld [vmem:[#allocation2 + $0x30] sm:$0xff]
    %v96 = vld [vmem:[#allocation2 + $0x38] sm:$0xff]
    %v97 = vld [vmem:[#allocation2 + $0x40] sm:$0xff]
    %v98 = vld [vmem:[#allocation2 + $0x48] sm:$0xff]
    %v99 = vld [vmem:[#allocation2 + $0x50] sm:$0xff]
    %v100 = vld [vmem:[#allocation2 + $0x58] sm:$0xff]
    %v101 = vld [vmem:[#allocation2 + $0x60] sm:$0xff]
    %v102 = vld [vmem:[#allocation2 + $0x68] sm:$0xff]
    %v103 = vld [vmem:[#allocation2 + $0x70] sm:$0xff]
    %v104 = vld [vmem:[#allocation2 + $0x78] sm:$0xff]
    %v105 = vld [vmem:[#allocation2 + $0x80] sm:$0xff]
    %v106 = vld [vmem:[#allocation2 + $0x88] sm:$0xff]
    %v107 = vld [vmem:[#allocation2 + $0x90] sm:$0xff]
    %v108 = vld [vmem:[#allocation2 + $0x98] sm:$0xff]
    %v109 = vld [vmem:[#allocation2 + $0xa0] sm:$0xff]
    %v110 = vld [vmem:[#allocation2 + $0xa8] sm:$0xff]
    %v111 = vld [vmem:[#allocation2 + $0xb0] sm:$0xff]
    %v112 = vld [vmem:[#allocation2 + $0xb8] sm:$0xff]
    %v113 = vld [vmem:[#allocation2 + $0xc0] sm:$0xff]
    %v114 = vld [vmem:[#allocation2 + $0xc8] sm:$0xff]
    %v115 = vld [vmem:[#allocation2 + $0xd0] sm:$0xff]
    %v116 = vld [vmem:[#allocation2 + $0xd8] sm:$0xff]
    %v117 = vld [vmem:[#allocation2 + $0xe0] sm:$0xff]
    %v118 = vld [vmem:[#allocation2 + $0xe8] sm:$0xff]
    %v119 = vld [vmem:[#allocation2 + $0xf0] sm:$0xff]
    %v120 = vld [vmem:[#allocation2 + $0xf8] sm:$0xff]
    %v121 = vld [vmem:[%s2] sm:$0x3]
    %v123 = vlaneseq
    %v124 = vshrl.u32 %v123, 7
    %v125 = vsub.s32 0, %v124
    %v126 = vrot.slane %v121, %v125
    %v127 = vlaneseq
    %v128 = vshrl.u32 %v127, 7
    %v129 = vsub.s32 1, %v128
    %v130 = vrot.slane %v121, %v129
    %133 = vmatprep.subr.mxu0 %v120
    %134 = vmatpush1.msra.mxu0 %v119
    %135 = vmatprep.subr.mxu0 %v118
    %136 = vmatpush1.msra.mxu0 %v117
    %137 = vmatprep.subr.mxu0 %v116
    %138 = vmatpush1.msra.mxu0 %v115
    %139 = vmatprep.subr.mxu0 %v114
    %140 = vmatpush1.msra.mxu0 %v113
    %141 = vmatprep.subr.mxu0 %v112
    %142 = vmatpush1.msra.mxu0 %v111
    %143 = vmatprep.subr.mxu0 %v110
    %144 = vmatpush1.msra.mxu0 %v109
    %145 = vmatprep.subr.mxu0 %v108
    %146 = vmatpush1.msra.mxu0 %v107
    %147 = vmatprep.subr.mxu0 %v106
    %148 = vmatpush1.msra.mxu0 %v105
    %149 = vmatprep.subr.mxu0 %v104
    %150 = vmatpush1.msra.mxu0 %v103
    %151 = vmatprep.subr.mxu0 %v102
    %152 = vmatpush1.msra.mxu0 %v101
    %153 = vmatprep.subr.mxu0 %v100
    %154 = vmatpush1.msra.mxu0 %v99
    %155 = vmatprep.subr.mxu0 %v98
    %156 = vmatpush1.msra.mxu0 %v97
    %157 = vmatprep.subr.mxu0 %v96
    %158 = vmatpush1.msra.mxu0 %v95
    %159 = vmatprep.subr.mxu0 %v94
    %160 = vmatpush1.msra.mxu0 %v93
    %161 = vmatprep.subr.mxu0 %v92
    %162 = vmatpush1.msra.mxu0 %v91
    %163 = vmatprep.subr.mxu0 %v90
    %164 = vmatpush1.msra.mxu0 %v89
    %165 = vmatprep.subr.mxu0 0.0
    %166 = vmatpush2.msra.mxu0 0.0
    %167 = vmatprep.subr.mxu0 0.0
    %168 = vmatpush2.msra.mxu0 0.0
    %169 = vmatprep.subr.mxu0 0.0
    %170 = vmatpush2.msra.mxu0 0.0
    %171 = vmatprep.subr.mxu0 0.0
    %172 = vmatpush2.msra.mxu0 0.0
    %173 = vmatprep.subr.mxu0 0.0
    %174 = vmatpush2.msra.mxu0 0.0
    %175 = vmatprep.subr.mxu0 0.0
    %176 = vmatpush2.msra.mxu0 0.0
    %177 = vmatprep.subr.mxu0 0.0
    %178 = vmatpush2.msra.mxu0 0.0
    %179 = vmatprep.subr.mxu0 0.0
    %180 = vmatpush2.msra.mxu0 0.0
    %181 = vmatprep.subr.mxu0 0.0
    %182 = vmatpush2.msra.mxu0 0.0
    %183 = vmatprep.subr.mxu0 0.0
    %184 = vmatpush2.msra.mxu0 0.0
    %185 = vmatprep.subr.mxu0 0.0
    %186 = vmatpush2.msra.mxu0 0.0
    %187 = vmatprep.subr.mxu0 0.0
    %188 = vmatpush2.msra.mxu0 0.0
    %189 = vmatprep.subr.mxu0 0.0
    %190 = vmatpush2.msra.mxu0 0.0
    %191 = vmatprep.subr.mxu0 0.0
    %192 = vmatpush2.msra.mxu0 0.0
    %193 = vmatprep.subr.mxu0 0.0
    %194 = vmatpush2.msra.mxu0 0.0
    %195 = vmatprep.subr.mxu0 0.0
    %196 = vmatpush2.msra.mxu0 0.0
    %197 = vmatprep.mubr.f32.mxu0 0.0
    %198 = vmatmul.mubr.f32.gmra.mxu0 %v88
    %v199 = vpop.f32.mrf.mxu0
    %v200 = vadd.f32 %v126, %v199
    %v201 = vpop.f32.mrf.mxu0
    %v202 = vadd.f32 %v130, %v201
    %203 = vdwg.mxu0
    %v204 = vmax.f32 %v200, 0.0
    %v205 = vmax.f32 %v202, 0.0
    %v206 = vld [vmem:[#allocation5] sm:$0xff]
    %v207 = vld [vmem:[#allocation5 + $0x8] sm:$0xff]
    %v208 = vld [vmem:[#allocation5 + $0x10] sm:$0xff]
    %v209 = vld [vmem:[#allocation5 + $0x18] sm:$0xff]
    %v210 = vld [vmem:[#allocation5 + $0x20] sm:$0xff]
    %v211 = vld [vmem:[#allocation5 + $0x28] sm:$0xff]
    %v212 = vld [vmem:[#allocation5 + $0x30] sm:$0xff]
    %v213 = vld [vmem:[#allocation5 + $0x38] sm:$0xff]
    %v214 = vld [vmem:[#allocation5 + $0x40] sm:$0xff]
    %v215 = vld [vmem:[#allocation5 + $0x48] sm:$0xff]
    %v216 = vld [vmem:[#allocation5 + $0x50] sm:$0xff]
    %v217 = vld [vmem:[#allocation5 + $0x58] sm:$0xff]
    %v218 = vld [vmem:[#allocation5 + $0x60] sm:$0xff]
    %v219 = vld [vmem:[#allocation5 + $0x68] sm:$0xff]
    %v220 = vld [vmem:[#allocation5 + $0x70] sm:$0xff]
    %v221 = vld [vmem:[#allocation5 + $0x78] sm:$0xff]
    %v222 = vld [vmem:[#allocation5 + $0x80] sm:$0xff]
    %v223 = vld [vmem:[#allocation5 + $0x88] sm:$0xff]
    %v224 = vld [vmem:[#allocation5 + $0x90] sm:$0xff]
    %v225 = vld [vmem:[#allocation5 + $0x98] sm:$0xff]
    %v226 = vld [vmem:[#allocation5 + $0xa0] sm:$0xff]
    %v227 = vld [vmem:[#allocation5 + $0xa8] sm:$0xff]
    %v228 = vld [vmem:[#allocation5 + $0xb0] sm:$0xff]
    %v229 = vld [vmem:[#allocation5 + $0xb8] sm:$0xff]
    %v230 = vld [vmem:[#allocation5 + $0xc0] sm:$0xff]
    %v231 = vld [vmem:[#allocation5 + $0xc8] sm:$0xff]
    %v232 = vld [vmem:[#allocation5 + $0xd0] sm:$0xff]
    %v233 = vld [vmem:[#allocation5 + $0xd8] sm:$0xff]
    %v234 = vld [vmem:[#allocation5 + $0xe0] sm:$0xff]
    %v235 = vld [vmem:[#allocation5 + $0xe8] sm:$0xff]
    %v236 = vld [vmem:[#allocation5 + $0xf0] sm:$0xff]
    %v237 = vld [vmem:[#allocation5 + $0xf8] sm:$0xff]
    %v238 = vld [vmem:[%s4] sm:$0x1]
    %v240 = vlaneseq
    %v241 = vshrl.u32 %v240, 7
    %v242 = vsub.s32 0, %v241
    %v243 = vrot.slane %v238, %v242
    %245 = vmatprep.subr.mxu0 0.0
    %246 = vmatpush1.msra.mxu0 %v221
    %247 = vmatprep.subr.mxu0 0.0
    %248 = vmatpush1.msra.mxu0 %v220
    %249 = vmatprep.subr.mxu0 0.0
    %250 = vmatpush1.msra.mxu0 %v219
    %251 = vmatprep.subr.mxu0 0.0
    %252 = vmatpush1.msra.mxu0 %v218
    %253 = vmatprep.subr.mxu0 0.0
    %254 = vmatpush1.msra.mxu0 %v217
    %255 = vmatprep.subr.mxu0 0.0
    %256 = vmatpush1.msra.mxu0 %v216
    %257 = vmatprep.subr.mxu0 0.0
    %258 = vmatpush1.msra.mxu0 %v215
    %259 = vmatprep.subr.mxu0 0.0
    %260 = vmatpush1.msra.mxu0 %v214
    %261 = vmatprep.subr.mxu0 0.0
    %262 = vmatpush1.msra.mxu0 %v213
    %263 = vmatprep.subr.mxu0 0.0
    %264 = vmatpush1.msra.mxu0 %v212
    %265 = vmatprep.subr.mxu0 0.0
    %266 = vmatpush1.msra.mxu0 %v211
    %267 = vmatprep.subr.mxu0 0.0
    %268 = vmatpush1.msra.mxu0 %v210
    %269 = vmatprep.subr.mxu0 0.0
    %270 = vmatpush1.msra.mxu0 %v209
    %271 = vmatprep.subr.mxu0 0.0
    %272 = vmatpush1.msra.mxu0 %v208
    %273 = vmatprep.subr.mxu0 0.0
    %274 = vmatpush1.msra.mxu0 %v207
    %275 = vmatprep.subr.mxu0 0.0
    %276 = vmatpush1.msra.mxu0 %v206
    %277 = vmatprep.subr.mxu0 0.0
    %278 = vmatpush2.msra.mxu0 %v237
    %279 = vmatprep.subr.mxu0 0.0
    %280 = vmatpush2.msra.mxu0 %v236
    %281 = vmatprep.subr.mxu0 0.0
    %282 = vmatpush2.msra.mxu0 %v235
    %283 = vmatprep.subr.mxu0 0.0
    %284 = vmatpush2.msra.mxu0 %v234
    %285 = vmatprep.subr.mxu0 0.0
    %286 = vmatpush2.msra.mxu0 %v233
    %287 = vmatprep.subr.mxu0 0.0
    %288 = vmatpush2.msra.mxu0 %v232
    %289 = vmatprep.subr.mxu0 0.0
    %290 = vmatpush2.msra.mxu0 %v231
    %291 = vmatprep.subr.mxu0 0.0
    %292 = vmatpush2.msra.mxu0 %v230
    %293 = vmatprep.subr.mxu0 0.0
    %294 = vmatpush2.msra.mxu0 %v229
    %295 = vmatprep.subr.mxu0 0.0
    %296 = vmatpush2.msra.mxu0 %v228
    %297 = vmatprep.subr.mxu0 0.0
    %298 = vmatpush2.msra.mxu0 %v227
    %299 = vmatprep.subr.mxu0 0.0
    %300 = vmatpush2.msra.mxu0 %v226
    %301 = vmatprep.subr.mxu0 0.0
    %302 = vmatpush2.msra.mxu0 %v225
    %303 = vmatprep.subr.mxu0 0.0
    %304 = vmatpush2.msra.mxu0 %v224
    %305 = vmatprep.subr.mxu0 0.0
    %306 = vmatpush2.msra.mxu0 %v223
    %307 = vmatprep.subr.mxu0 0.0
    %308 = vmatpush2.msra.mxu0 %v222
    %309 = vmatprep.mubr.f32.mxu0 %v205
    %310 = vmatmul.mubr.f32.gmra.mxu0 %v204
    %v311 = vpop.f32.mrf.mxu0
    %v312 = vadd.f32 %v243, %v311
    %v313 = vpop.f32.mrf.mxu0
    %314 = vdwg.mxu0
    %v315 = vmax.f32 %v312, 0.0
    %v316 = vld [vmem:[#allocation7] sm:$0xff]
    %v317 = vld [vmem:[#allocation7 + $0x8] sm:$0xff]
    %v318 = vld [vmem:[#allocation7 + $0x10] sm:$0xff]
    %v319 = vld [vmem:[#allocation7 + $0x18] sm:$0xff]
    %v320 = vld [vmem:[#allocation7 + $0x20] sm:$0xff]
    %v321 = vld [vmem:[#allocation7 + $0x28] sm:$0xff]
    %v322 = vld [vmem:[#allocation7 + $0x30] sm:$0xff]
    %v323 = vld [vmem:[#allocation7 + $0x38] sm:$0xff]
    %v324 = vld [vmem:[#allocation7 + $0x40] sm:$0xff]
    %v325 = vld [vmem:[#allocation7 + $0x48] sm:$0xff]
    %v326 = vld [vmem:[#allocation7 + $0x50] sm:$0xff]
    %v327 = vld [vmem:[#allocation7 + $0x58] sm:$0xff]
    %v328 = vld [vmem:[#allocation7 + $0x60] sm:$0xff]
    %v329 = vld [vmem:[#allocation7 + $0x68] sm:$0xff]
    %v330 = vld [vmem:[#allocation7 + $0x70] sm:$0xff]
    %v331 = vld [vmem:[#allocation7 + $0x78] sm:$0xff]
    %v332 = vld [vmem:[%s6] sm:$0x1]
    %v334 = vlaneseq
    %v335 = vshrl.u32 %v334, 7
    %v336 = vsub.s32 0, %v335
    %v337 = vrot.slane %v332, %v336
    %339 = vmatprep.subr.mxu0 0.0
    %340 = vmatpush1.msra.mxu0 %v331
    %341 = vmatprep.subr.mxu0 0.0
    %342 = vmatpush1.msra.mxu0 %v330
    %343 = vmatprep.subr.mxu0 0.0
    %344 = vmatpush1.msra.mxu0 %v329
    %345 = vmatprep.subr.mxu0 0.0
    %346 = vmatpush1.msra.mxu0 %v328
    %347 = vmatprep.subr.mxu0 0.0
    %348 = vmatpush1.msra.mxu0 %v327
    %349 = vmatprep.subr.mxu0 0.0
    %350 = vmatpush1.msra.mxu0 %v326
    %351 = vmatprep.subr.mxu0 0.0
    %352 = vmatpush1.msra.mxu0 %v325
    %353 = vmatprep.subr.mxu0 0.0
    %354 = vmatpush1.msra.mxu0 %v324
    %355 = vmatprep.subr.mxu0 0.0
    %356 = vmatpush1.msra.mxu0 %v323
    %357 = vmatprep.subr.mxu0 0.0
    %358 = vmatpush1.msra.mxu0 %v322
    %359 = vmatprep.subr.mxu0 0.0
    %360 = vmatpush1.msra.mxu0 %v321
    %361 = vmatprep.subr.mxu0 0.0
    %362 = vmatpush1.msra.mxu0 %v320
    %363 = vmatprep.subr.mxu0 0.0
    %364 = vmatpush1.msra.mxu0 %v319
    %365 = vmatprep.subr.mxu0 0.0
    %366 = vmatpush1.msra.mxu0 %v318
    %367 = vmatprep.subr.mxu0 0.0
    %368 = vmatpush1.msra.mxu0 %v317
    %369 = vmatprep.subr.mxu0 0.0
    %370 = vmatpush1.msra.mxu0 %v316
    %371 = vmatprep.subr.mxu0 0.0
    %372 = vmatpush2.msra.mxu0 0.0
    %373 = vmatprep.subr.mxu0 0.0
    %374 = vmatpush2.msra.mxu0 0.0
    %375 = vmatprep.subr.mxu0 0.0
    %376 = vmatpush2.msra.mxu0 0.0
    %377 = vmatprep.subr.mxu0 0.0
    %378 = vmatpush2.msra.mxu0 0.0
    %379 = vmatprep.subr.mxu0 0.0
    %380 = vmatpush2.msra.mxu0 0.0
    %381 = vmatprep.subr.mxu0 0.0
    %382 = vmatpush2.msra.mxu0 0.0
    %383 = vmatprep.subr.mxu0 0.0
    %384 = vmatpush2.msra.mxu0 0.0
    %385 = vmatprep.subr.mxu0 0.0
    %386 = vmatpush2.msra.mxu0 0.0
    %387 = vmatprep.subr.mxu0 0.0
    %388 = vmatpush2.msra.mxu0 0.0
    %389 = vmatprep.subr.mxu0 0.0
    %390 = vmatpush2.msra.mxu0 0.0
    %391 = vmatprep.subr.mxu0 0.0
    %392 = vmatpush2.msra.mxu0 0.0
    %393 = vmatprep.subr.mxu0 0.0
    %394 = vmatpush2.msra.mxu0 0.0
    %395 = vmatprep.subr.mxu0 0.0
    %396 = vmatpush2.msra.mxu0 0.0
    %397 = vmatprep.subr.mxu0 0.0
    %398 = vmatpush2.msra.mxu0 0.0
    %399 = vmatprep.subr.mxu0 0.0
    %400 = vmatpush2.msra.mxu0 0.0
    %401 = vmatprep.subr.mxu0 0.0
    %402 = vmatpush2.msra.mxu0 0.0
    %403 = vmatprep.mubr.f32.mxu0 0.0
    %404 = vmatmul.mubr.f32.gmra.mxu0 %v315
    %v405 = vpop.f32.mrf.mxu0
    %v406 = vadd.f32 %v337, %v405
    %v407 = vpop.f32.mrf.mxu0
    %408 = vdwg.mxu0
    %v409 = vmax.f32 %v406, 0.0
    %v410 = vld [vmem:[#allocation8] sm:$0xff]
    %v411 = vld [vmem:[#allocation8 + $0x8] sm:$0xff]
    %v412 = vld [vmem:[#allocation8 + $0x10] sm:$0xff]
    %v413 = vld [vmem:[#allocation8 + $0x18] sm:$0xff]
    %v414 = vld [vmem:[#allocation8 + $0x20] sm:$0xff]
    %v415 = vld [vmem:[#allocation8 + $0x28] sm:$0xff]
    %v416 = vld [vmem:[#allocation8 + $0x30] sm:$0xff]
    %v417 = vld [vmem:[#allocation8 + $0x38] sm:$0xff]
    %v418 = vld [vmem:[#allocation8 + $0x40] sm:$0xff]
    %v419 = vld [vmem:[#allocation8 + $0x48] sm:$0xff]
    %v420 = vld [vmem:[#allocation8 + $0x50] sm:$0xff]
    %v421 = vld [vmem:[#allocation8 + $0x58] sm:$0xff]
    %v422 = vld [vmem:[#allocation8 + $0x60] sm:$0xff]
    %v423 = vld [vmem:[#allocation8 + $0x68] sm:$0xff]
    %v424 = vld [vmem:[#allocation8 + $0x70] sm:$0xff]
    %v425 = vld [vmem:[#allocation8 + $0x78] sm:$0xff]
    %v426 = vld [vmem:[%s8] sm:$0x1]
    %v428 = vlaneseq
    %v429 = vshrl.u32 %v428, 7
    %v430 = vsub.s32 0, %v429
    %v431 = vrot.slane %v426, %v430
    %433 = vmatprep.subr.mxu0 0.0
    %434 = vmatpush1.msra.mxu0 %v425
    %435 = vmatprep.subr.mxu0 0.0
    %436 = vmatpush1.msra.mxu0 %v424
    %437 = vmatprep.subr.mxu0 0.0
    %438 = vmatpush1.msra.mxu0 %v423
    %439 = vmatprep.subr.mxu0 0.0
    %440 = vmatpush1.msra.mxu0 %v422
    %441 = vmatprep.subr.mxu0 0.0
    %442 = vmatpush1.msra.mxu0 %v421
    %443 = vmatprep.subr.mxu0 0.0
    %444 = vmatpush1.msra.mxu0 %v420
    %445 = vmatprep.subr.mxu0 0.0
    %446 = vmatpush1.msra.mxu0 %v419
    %447 = vmatprep.subr.mxu0 0.0
    %448 = vmatpush1.msra.mxu0 %v418
    %449 = vmatprep.subr.mxu0 0.0
    %450 = vmatpush1.msra.mxu0 %v417
    %451 = vmatprep.subr.mxu0 0.0
    %452 = vmatpush1.msra.mxu0 %v416
    %453 = vmatprep.subr.mxu0 0.0
    %454 = vmatpush1.msra.mxu0 %v415
    %455 = vmatprep.subr.mxu0 0.0
    %456 = vmatpush1.msra.mxu0 %v414
    %457 = vmatprep.subr.mxu0 0.0
    %458 = vmatpush1.msra.mxu0 %v413
    %459 = vmatprep.subr.mxu0 0.0
    %460 = vmatpush1.msra.mxu0 %v412
    %461 = vmatprep.subr.mxu0 0.0
    %462 = vmatpush1.msra.mxu0 %v411
    %463 = vmatprep.subr.mxu0 0.0
    %464 = vmatpush1.msra.mxu0 %v410
    %465 = vmatprep.subr.mxu0 0.0
    %466 = vmatpush2.msra.mxu0 0.0
    %467 = vmatprep.subr.mxu0 0.0
    %468 = vmatpush2.msra.mxu0 0.0
    %469 = vmatprep.subr.mxu0 0.0
    %470 = vmatpush2.msra.mxu0 0.0
    %471 = vmatprep.subr.mxu0 0.0
    %472 = vmatpush2.msra.mxu0 0.0
    %473 = vmatprep.subr.mxu0 0.0
    %474 = vmatpush2.msra.mxu0 0.0
    %475 = vmatprep.subr.mxu0 0.0
    %476 = vmatpush2.msra.mxu0 0.0
    %477 = vmatprep.subr.mxu0 0.0
    %478 = vmatpush2.msra.mxu0 0.0
    %479 = vmatprep.subr.mxu0 0.0
    %480 = vmatpush2.msra.mxu0 0.0
    %481 = vmatprep.subr.mxu0 0.0
    %482 = vmatpush2.msra.mxu0 0.0
    %483 = vmatprep.subr.mxu0 0.0
    %484 = vmatpush2.msra.mxu0 0.0
    %485 = vmatprep.subr.mxu0 0.0
    %486 = vmatpush2.msra.mxu0 0.0
    %487 = vmatprep.subr.mxu0 0.0
    %488 = vmatpush2.msra.mxu0 0.0
    %489 = vmatprep.subr.mxu0 0.0
    %490 = vmatpush2.msra.mxu0 0.0
    %491 = vmatprep.subr.mxu0 0.0
    %492 = vmatpush2.msra.mxu0 0.0
    %493 = vmatprep.subr.mxu0 0.0
    %494 = vmatpush2.msra.mxu0 0.0
    %495 = vmatprep.subr.mxu0 0.0
    %496 = vmatpush2.msra.mxu0 0.0
    %497 = vmatprep.mubr.f32.mxu0 0.0
    %498 = vmatmul.mubr.f32.gmra.mxu0 %v409
    %v499 = vpop.f32.mrf.mxu0
    %v500 = vadd.f32 %v431, %v499
    %v501 = vpop.f32.mrf.mxu0
    %502 = vdwg.mxu0
    %503 = vst [vmem:[#allocation10] sm:$0xff] %v500
    // Predicated region
    $region54: #{mlp_forward.1} parent=1 // pred_check
      _
    $region55: #{mlp_forward.1} parent=1 // pred_check_branch
      %505 = sbr.rel (0) target = $region57
    $region56: #{mlp_forward.1} parent=1 // pred_region
      %s507 = ssub.s32 128, 128
      %508 = vsyncadd [#allocation4], %s507
      %s510 = sshll.u32 [#allocation10], 4
      %s511 = int_to_ptr.vmem [resolvable:$true] %s510
      %513 = dma.vmem_to_hbm [thread:$0]  %s511, 128, %s9, [#allocation4]
    $region57: #{mlp_forward.1} parent=1 // pred_fallthru
      _
    // Predicated region
    $region58: #{mlp_forward.1} parent=1 // pred_check
      _
    $region59: #{mlp_forward.1} parent=1 // pred_check_branch
      %515 = sbr.rel (0) target = $region61
    $region60: #{mlp_forward.1} parent=1 // pred_region
      %516 = dma.done [#allocation4], 128
    $region61: #{mlp_forward.1} parent=1 // pred_fallthru
      _
    %517 = vsyncpa [#allocation3], 1
    %518 = vsyncpa [#allocation6], 1
    %519 = vsyncpa [#allocation9], 1
    %520 = vsyncpa [#allocation4], 1

// kernel: mlp_forward.1
$region0: #{mlp_forward.1}
  #allocation0 [shape = 'u32[]', space=smem, size = 0x4, offset = 0x4, fixed_abs, tag = 'smem constant byte address 0x4 - core index']
  #allocation1 [shape = 'u32[144,128]{1,0:T(1,128)}', space=vmem, size = 0x12000, scoped, tag = 'internal scratch']
  %s0 = inlined_call_operand.vmem [shape: f32[8,128], index: 0, kind: input, shape index: {}]
  %s1 = inlined_call_operand.hbm [shape: f32[128,256], index: 1, kind: input, shape index: {}]
  %s2 = inlined_call_operand.vmem [shape: f32[1,256], index: 2, kind: input, shape index: {}]
  %s3 = inlined_call_operand.hbm [shape: f32[256,128], index: 3, kind: input, shape index: {}]
  %s4 = inlined_call_operand.vmem [shape: f32[1,128], index: 4, kind: input, shape index: {}]
  %s5 = inlined_call_operand.hbm [shape: f32[128,128], index: 5, kind: input, shape index: {}]
  %s6 = inlined_call_operand.vmem [shape: f32[1,128], index: 6, kind: input, shape index: {}]
  %s7 = inlined_call_operand.hbm [shape: f32[128,128], index: 7, kind: input, shape index: {}]
  %s8 = inlined_call_operand.vmem [shape: f32[1,128], index: 8, kind: input, shape index: {}]
  %s9 = inlined_call_operand.hbm [shape: f32[8,128], index: 9, kind: output, shape index: {}]
  %s10 = sld [smem:[#allocation0]]
  $region62: #{mlp_forward.1} parent=0
    _
  %s12 = ssub.s32 1, %s10
  %s13 = scalar_select 0, %s12, %s10
  $region1: #{mlp_forward.1} parent=0
    #allocation2 [shape = 'u8[131072]{0}', space=vmem, size = 0x20000, scoped, tag = 'input window, operand 1, single buffered']
    #allocation3 [shape = 's32[1]{0}', space=sflag, size = 0x4, scoped, tag = 'scoped memory for mlp_forward.1']
    #allocation4 [shape = 's32[1]{0}', space=sflag, size = 0x4, scoped, tag = 'scoped memory for mlp_forward.1']
    #allocation5 [shape = 'u8[131072]{0}', space=vmem, size = 0x20000, scoped, tag = 'input window, operand 3, single buffered']
    #allocation6 [shape = 's32[1]{0}', space=sflag, size = 0x4, scoped, tag = 'scoped memory for mlp_forward.1']
    #allocation7 [shape = 'u8[65536]{0}', space=vmem, size = 0x10000, scoped, tag = 'input window, operand 5, single buffered']
    #allocation8 [shape = 'u8[65536]{0}', space=vmem, size = 0x10000, scoped, tag = 'input window, operand 7, single buffered']
    #allocation9 [shape = 's32[1]{0}', space=sflag, size = 0x4, scoped, tag = 'scoped memory for mlp_forward.1']
    #allocation10 [shape = 'u8[4096]{0}', space=vmem, size = 0x1000, scoped, tag = 'output window, operand 0, single buffered']
    %14 = vsyncpa [#allocation3], 0
    %15 = vsyncpa [#allocation6], 0
    %16 = vsyncpa [#allocation9], 0
    %17 = vsyncpa [#allocation4], 0
    // Predicated region
    $region2: #{mlp_forward.1} parent=1 // pred_check
      _
    $region3: #{mlp_forward.1} parent=1 // pred_check_branch
      %19 = sbr.rel (0) target = $region5
    $region4: #{mlp_forward.1} parent=1 // pred_region
      _
    $region5: #{mlp_forward.1} parent=1 // pred_fallthru
      _
    // Predicated region
    $region6: #{mlp_forward.1} parent=1 // pred_check
      _
    $region7: #{mlp_forward.1} parent=1 // pred_check_branch
      %21 = sbr.rel (0) target = $region9
    $region8: #{mlp_forward.1} parent=1 // pred_region
      %s23 = ssub.s32 4096, 4096
      %24 = vsyncadd [#allocation3], %s23
      %s25 = sshll.u32 [#allocation2], 4
      %s26 = int_to_ptr.vmem [resolvable:$true] %s25
      %31 = dma.hbm_to_vmem [thread:$0]  %s1, 4096, %s26, [#allocation3], 256, 256, 16
    $region9: #{mlp_forward.1} parent=1 // pred_fallthru
      _
    // Predicated region
    $region10: #{mlp_forward.1} parent=1 // pred_check
      _
    $region11: #{mlp_forward.1} parent=1 // pred_check_branch
      %33 = sbr.rel (0) target = $region13
    $region12: #{mlp_forward.1} parent=1 // pred_region
      _
    $region13: #{mlp_forward.1} parent=1 // pred_fallthru
      _
    // Predicated region
    $region14: #{mlp_forward.1} parent=1 // pred_check
      _
    $region15: #{mlp_forward.1} parent=1 // pred_check_branch
      %35 = sbr.rel (0) target = $region17
    $region16: #{mlp_forward.1} parent=1 // pred_region
      %s37 = ssub.s32 4096, 4096
      %38 = vsyncadd [#allocation6], %s37
      %s39 = sshll.u32 [#allocation5], 4
      %s40 = int_to_ptr.vmem [resolvable:$true] %s39
      %45 = dma.hbm_to_vmem [thread:$0]  %s3, 4096, %s40, [#allocation6], 128, 128, 8
    $region17: #{mlp_forward.1} parent=1 // pred_fallthru
      _
    // Predicated region
    $region18: #{mlp_forward.1} parent=1 // pred_check
      _
    $region19: #{mlp_forward.1} parent=1 // pred_check_branch
      %47 = sbr.rel (0) target = $region21
    $region20: #{mlp_forward.1} parent=1 // pred_region
      _
    $region21: #{mlp_forward.1} parent=1 // pred_fallthru
      _
    // Predicated region
    $region22: #{mlp_forward.1} parent=1 // pred_check
      _
    $region23: #{mlp_forward.1} parent=1 // pred_check_branch
      %49 = sbr.rel (0) target = $region25
    $region24: #{mlp_forward.1} parent=1 // pred_region
      %s51 = ssub.s32 2048, 2048
      %52 = vsyncadd [#allocation6], %s51
      %s53 = sshll.u32 [#allocation7], 4
      %s54 = int_to_ptr.vmem [resolvable:$true] %s53
      %59 = dma.hbm_to_vmem [thread:$0]  %s5, 2048, %s54, [#allocation6], 128, 128, 8
    $region25: #{mlp_forward.1} parent=1 // pred_fallthru
      _
    // Predicated region
    $region26: #{mlp_forward.1} parent=1 // pred_check
      _
    $region27: #{mlp_forward.1} parent=1 // pred_check_branch
      %61 = sbr.rel (0) target = $region29
    $region28: #{mlp_forward.1} parent=1 // pred_region
      _
    $region29: #{mlp_forward.1} parent=1 // pred_fallthru
      _
    // Predicated region
    $region30: #{mlp_forward.1} parent=1 // pred_check
      _
    $region31: #{mlp_forward.1} parent=1 // pred_check_branch
      %63 = sbr.rel (0) target = $region33
    $region32: #{mlp_forward.1} parent=1 // pred_region
      %s65 = ssub.s32 2048, 2048
      %66 = vsyncadd [#allocation9], %s65
      %s67 = sshll.u32 [#allocation8], 4
      %s68 = int_to_ptr.vmem [resolvable:$true] %s67
      %73 = dma.hbm_to_vmem [thread:$0]  %s7, 2048, %s68, [#allocation9], 128, 128, 8
    $region33: #{mlp_forward.1} parent=1 // pred_fallthru
      _
    // Predicated region
    $region34: #{mlp_forward.1} parent=1 // pred_check
      _
    $region35: #{mlp_forward.1} parent=1 // pred_check_branch
      %75 = sbr.rel (0) target = $region37
    $region36: #{mlp_forward.1} parent=1 // pred_region
      _
    $region37: #{mlp_forward.1} parent=1 // pred_fallthru
      _
    // Predicated region
    $region38: #{mlp_forward.1} parent=1 // pred_check
      _
    $region39: #{mlp_forward.1} parent=1 // pred_check_branch
      %77 = sbr.rel (0) target = $region41
    $region40: #{mlp_forward.1} parent=1 // pred_region
      %78 = dma.done [#allocation3], 4096
    $region41: #{mlp_forward.1} parent=1 // pred_fallthru
      _
    // Predicated region
    $region42: #{mlp_forward.1} parent=1 // pred_check
      _
    $region43: #{mlp_forward.1} parent=1 // pred_check_branch
      %80 = sbr.rel (0) target = $region45
    $region44: #{mlp_forward.1} parent=1 // pred_region
      %81 = dma.done [#allocation6], 4096
    $region45: #{mlp_forward.1} parent=1 // pred_fallthru
      _
    // Predicated region
    $region46: #{mlp_forward.1} parent=1 // pred_check
      _
    $region47: #{mlp_forward.1} parent=1 // pred_check_branch
      %83 = sbr.rel (0) target = $region49
    $region48: #{mlp_forward.1} parent=1 // pred_region
      %84 = dma.done [#allocation6], 2048
    $region49: #{mlp_forward.1} parent=1 // pred_fallthru
      _
    // Predicated region
    $region50: #{mlp_forward.1} parent=1 // pred_check
      _
    $region51: #{mlp_forward.1} parent=1 // pred_check_branch
      %86 = sbr.rel (0) target = $region53
    $region52: #{mlp_forward.1} parent=1 // pred_region
      %87 = dma.done [#allocation9], 2048
    $region53: #{mlp_forward.1} parent=1 // pred_fallthru
      _
    %v88 = vld [vmem:[%s0] sm:$0xff]
    %v89 = vld [vmem:[#allocation2] sm:$0xff]
    %v90 = vld [vmem:[#allocation2 + $0x8] sm:$0xff]
    %v91 = vld [vmem:[#allocation2 + $0x10] sm:$0xff]
    %v92 = vld [vmem:[#allocation2 + $0x18] sm:$0xff]
    %v93 = vld [vmem:[#allocation2 + $0x20] sm:$0xff]
    %v94 = vld [vmem:[#allocation2 + $0x28] sm:$0xff]
    %v95 = vld [vmem:[#allocation2 + $0x30] sm:$0xff]
    %v96 = vld [vmem:[#allocation2 + $0x38] sm:$0xff]
    %v97 = vld [vmem:[#allocation2 + $0x40] sm:$0xff]
    %v98 = vld [vmem:[#allocation2 + $0x48] sm:$0xff]
    %v99 = vld [vmem:[#allocation2 + $0x50] sm:$0xff]
    %v100 = vld [vmem:[#allocation2 + $0x58] sm:$0xff]
    %v101 = vld [vmem:[#allocation2 + $0x60] sm:$0xff]
    %v102 = vld [vmem:[#allocation2 + $0x68] sm:$0xff]
    %v103 = vld [vmem:[#allocation2 + $0x70] sm:$0xff]
    %v104 = vld [vmem:[#allocation2 + $0x78] sm:$0xff]
    %v105 = vld [vmem:[#allocation2 + $0x80] sm:$0xff]
    %v106 = vld [vmem:[#allocation2 + $0x88] sm:$0xff]
    %v107 = vld [vmem:[#allocation2 + $0x90] sm:$0xff]
    %v108 = vld [vmem:[#allocation2 + $0x98] sm:$0xff]
    %v109 = vld [vmem:[#allocation2 + $0xa0] sm:$0xff]
    %v110 = vld [vmem:[#allocation2 + $0xa8] sm:$0xff]
    %v111 = vld [vmem:[#allocation2 + $0xb0] sm:$0xff]
    %v112 = vld [vmem:[#allocation2 + $0xb8] sm:$0xff]
    %v113 = vld [vmem:[#allocation2 + $0xc0] sm:$0xff]
    %v114 = vld [vmem:[#allocation2 + $0xc8] sm:$0xff]
    %v115 = vld [vmem:[#allocation2 + $0xd0] sm:$0xff]
    %v116 = vld [vmem:[#allocation2 + $0xd8] sm:$0xff]
    %v117 = vld [vmem:[#allocation2 + $0xe0] sm:$0xff]
    %v118 = vld [vmem:[#allocation2 + $0xe8] sm:$0xff]
    %v119 = vld [vmem:[#allocation2 + $0xf0] sm:$0xff]
    %v120 = vld [vmem:[#allocation2 + $0xf8] sm:$0xff]
    %v121 = vld [vmem:[%s2] sm:$0x3]
    %v123 = vlaneseq
    %v124 = vshrl.u32 %v123, 7
    %v125 = vsub.s32 0, %v124
    %v126 = vrot.slane %v121, %v125
    %v127 = vlaneseq
    %v128 = vshrl.u32 %v127, 7
    %v129 = vsub.s32 1, %v128
    %v130 = vrot.slane %v121, %v129
    %133 = vmatprep.subr.mxu0 %v120
    %134 = vmatpush1.msra.mxu0 %v119
    %135 = vmatprep.subr.mxu0 %v118
    %136 = vmatpush1.msra.mxu0 %v117
    %137 = vmatprep.subr.mxu0 %v116
    %138 = vmatpush1.msra.mxu0 %v115
    %139 = vmatprep.subr.mxu0 %v114
    %140 = vmatpush1.msra.mxu0 %v113
    %141 = vmatprep.subr.mxu0 %v112
    %142 = vmatpush1.msra.mxu0 %v111
    %143 = vmatprep.subr.mxu0 %v110
    %144 = vmatpush1.msra.mxu0 %v109
    %145 = vmatprep.subr.mxu0 %v108
    %146 = vmatpush1.msra.mxu0 %v107
    %147 = vmatprep.subr.mxu0 %v106
    %148 = vmatpush1.msra.mxu0 %v105
    %149 = vmatprep.subr.mxu0 %v104
    %150 = vmatpush1.msra.mxu0 %v103
    %151 = vmatprep.subr.mxu0 %v102
    %152 = vmatpush1.msra.mxu0 %v101
    %153 = vmatprep.subr.mxu0 %v100
    %154 = vmatpush1.msra.mxu0 %v99
    %155 = vmatprep.subr.mxu0 %v98
    %156 = vmatpush1.msra.mxu0 %v97
    %157 = vmatprep.subr.mxu0 %v96
    %158 = vmatpush1.msra.mxu0 %v95
    %159 = vmatprep.subr.mxu0 %v94
    %160 = vmatpush1.msra.mxu0 %v93
    %161 = vmatprep.subr.mxu0 %v92
    %162 = vmatpush1.msra.mxu0 %v91
    %163 = vmatprep.subr.mxu0 %v90
    %164 = vmatpush1.msra.mxu0 %v89
    %165 = vmatprep.subr.mxu0 0.0
    %166 = vmatpush2.msra.mxu0 0.0
    %167 = vmatprep.subr.mxu0 0.0
    %168 = vmatpush2.msra.mxu0 0.0
    %169 = vmatprep.subr.mxu0 0.0
    %170 = vmatpush2.msra.mxu0 0.0
    %171 = vmatprep.subr.mxu0 0.0
    %172 = vmatpush2.msra.mxu0 0.0
    %173 = vmatprep.subr.mxu0 0.0
    %174 = vmatpush2.msra.mxu0 0.0
    %175 = vmatprep.subr.mxu0 0.0
    %176 = vmatpush2.msra.mxu0 0.0
    %177 = vmatprep.subr.mxu0 0.0
    %178 = vmatpush2.msra.mxu0 0.0
    %179 = vmatprep.subr.mxu0 0.0
    %180 = vmatpush2.msra.mxu0 0.0
    %181 = vmatprep.subr.mxu0 0.0
    %182 = vmatpush2.msra.mxu0 0.0
    %183 = vmatprep.subr.mxu0 0.0
    %184 = vmatpush2.msra.mxu0 0.0
    %185 = vmatprep.subr.mxu0 0.0
    %186 = vmatpush2.msra.mxu0 0.0
    %187 = vmatprep.subr.mxu0 0.0
    %188 = vmatpush2.msra.mxu0 0.0
    %189 = vmatprep.subr.mxu0 0.0
    %190 = vmatpush2.msra.mxu0 0.0
    %191 = vmatprep.subr.mxu0 0.0
    %192 = vmatpush2.msra.mxu0 0.0
    %193 = vmatprep.subr.mxu0 0.0
    %194 = vmatpush2.msra.mxu0 0.0
    %195 = vmatprep.subr.mxu0 0.0
    %196 = vmatpush2.msra.mxu0 0.0
    %197 = vmatprep.mubr.f32.mxu0 0.0
    %198 = vmatmul.mubr.f32.gmra.mxu0 %v88
    %v199 = vpop.f32.mrf.mxu0
    %v200 = vadd.f32 %v126, %v199
    %v201 = vpop.f32.mrf.mxu0
    %v202 = vadd.f32 %v130, %v201
    %203 = vdwg.mxu0
    %v204 = vmax.f32 %v200, 0.0
    %v205 = vmax.f32 %v202, 0.0
    %v206 = vld [vmem:[#allocation5] sm:$0xff]
    %v207 = vld [vmem:[#allocation5 + $0x8] sm:$0xff]
    %v208 = vld [vmem:[#allocation5 + $0x10] sm:$0xff]
    %v209 = vld [vmem:[#allocation5 + $0x18] sm:$0xff]
    %v210 = vld [vmem:[#allocation5 + $0x20] sm:$0xff]
    %v211 = vld [vmem:[#allocation5 + $0x28] sm:$0xff]
    %v212 = vld [vmem:[#allocation5 + $0x30] sm:$0xff]
    %v213 = vld [vmem:[#allocation5 + $0x38] sm:$0xff]
    %v214 = vld [vmem:[#allocation5 + $0x40] sm:$0xff]
    %v215 = vld [vmem:[#allocation5 + $0x48] sm:$0xff]
    %v216 = vld [vmem:[#allocation5 + $0x50] sm:$0xff]
    %v217 = vld [vmem:[#allocation5 + $0x58] sm:$0xff]
    %v218 = vld [vmem:[#allocation5 + $0x60] sm:$0xff]
    %v219 = vld [vmem:[#allocation5 + $0x68] sm:$0xff]
    %v220 = vld [vmem:[#allocation5 + $0x70] sm:$0xff]
    %v221 = vld [vmem:[#allocation5 + $0x78] sm:$0xff]
    %v222 = vld [vmem:[#allocation5 + $0x80] sm:$0xff]
    %v223 = vld [vmem:[#allocation5 + $0x88] sm:$0xff]
    %v224 = vld [vmem:[#allocation5 + $0x90] sm:$0xff]
    %v225 = vld [vmem:[#allocation5 + $0x98] sm:$0xff]
    %v226 = vld [vmem:[#allocation5 + $0xa0] sm:$0xff]
    %v227 = vld [vmem:[#allocation5 + $0xa8] sm:$0xff]
    %v228 = vld [vmem:[#allocation5 + $0xb0] sm:$0xff]
    %v229 = vld [vmem:[#allocation5 + $0xb8] sm:$0xff]
    %v230 = vld [vmem:[#allocation5 + $0xc0] sm:$0xff]
    %v231 = vld [vmem:[#allocation5 + $0xc8] sm:$0xff]
    %v232 = vld [vmem:[#allocation5 + $0xd0] sm:$0xff]
    %v233 = vld [vmem:[#allocation5 + $0xd8] sm:$0xff]
    %v234 = vld [vmem:[#allocation5 + $0xe0] sm:$0xff]
    %v235 = vld [vmem:[#allocation5 + $0xe8] sm:$0xff]
    %v236 = vld [vmem:[#allocation5 + $0xf0] sm:$0xff]
    %v237 = vld [vmem:[#allocation5 + $0xf8] sm:$0xff]
    %v238 = vld [vmem:[%s4] sm:$0x1]
    %v240 = vlaneseq
    %v241 = vshrl.u32 %v240, 7
    %v242 = vsub.s32 0, %v241
    %v243 = vrot.slane %v238, %v242
    %245 = vmatprep.subr.mxu0 0.0
    %246 = vmatpush1.msra.mxu0 %v221
    %247 = vmatprep.subr.mxu0 0.0
    %248 = vmatpush1.msra.mxu0 %v220
    %249 = vmatprep.subr.mxu0 0.0
    %250 = vmatpush1.msra.mxu0 %v219
    %251 = vmatprep.subr.mxu0 0.0
    %252 = vmatpush1.msra.mxu0 %v218
    %253 = vmatprep.subr.mxu0 0.0
    %254 = vmatpush1.msra.mxu0 %v217
    %255 = vmatprep.subr.mxu0 0.0
    %256 = vmatpush1.msra.mxu0 %v216
    %257 = vmatprep.subr.mxu0 0.0
    %258 = vmatpush1.msra.mxu0 %v215
    %259 = vmatprep.subr.mxu0 0.0
    %260 = vmatpush1.msra.mxu0 %v214
    %261 = vmatprep.subr.mxu0 0.0
    %262 = vmatpush1.msra.mxu0 %v213
    %263 = vmatprep.subr.mxu0 0.0
    %264 = vmatpush1.msra.mxu0 %v212
    %265 = vmatprep.subr.mxu0 0.0
    %266 = vmatpush1.msra.mxu0 %v211
    %267 = vmatprep.subr.mxu0 0.0
    %268 = vmatpush1.msra.mxu0 %v210
    %269 = vmatprep.subr.mxu0 0.0
    %270 = vmatpush1.msra.mxu0 %v209
    %271 = vmatprep.subr.mxu0 0.0
    %272 = vmatpush1.msra.mxu0 %v208
    %273 = vmatprep.subr.mxu0 0.0
    %274 = vmatpush1.msra.mxu0 %v207
    %275 = vmatprep.subr.mxu0 0.0
    %276 = vmatpush1.msra.mxu0 %v206
    %277 = vmatprep.subr.mxu0 0.0
    %278 = vmatpush2.msra.mxu0 %v237
    %279 = vmatprep.subr.mxu0 0.0
    %280 = vmatpush2.msra.mxu0 %v236
    %281 = vmatprep.subr.mxu0 0.0
    %282 = vmatpush2.msra.mxu0 %v235
    %283 = vmatprep.subr.mxu0 0.0
    %284 = vmatpush2.msra.mxu0 %v234
    %285 = vmatprep.subr.mxu0 0.0
    %286 = vmatpush2.msra.mxu0 %v233
    %287 = vmatprep.subr.mxu0 0.0
    %288 = vmatpush2.msra.mxu0 %v232
    %289 = vmatprep.subr.mxu0 0.0
    %290 = vmatpush2.msra.mxu0 %v231
    %291 = vmatprep.subr.mxu0 0.0
    %292 = vmatpush2.msra.mxu0 %v230
    %293 = vmatprep.subr.mxu0 0.0
    %294 = vmatpush2.msra.mxu0 %v229
    %295 = vmatprep.subr.mxu0 0.0
    %296 = vmatpush2.msra.mxu0 %v228
    %297 = vmatprep.subr.mxu0 0.0
    %298 = vmatpush2.msra.mxu0 %v227
    %299 = vmatprep.subr.mxu0 0.0
    %300 = vmatpush2.msra.mxu0 %v226
    %301 = vmatprep.subr.mxu0 0.0
    %302 = vmatpush2.msra.mxu0 %v225
    %303 = vmatprep.subr.mxu0 0.0
    %304 = vmatpush2.msra.mxu0 %v224
    %305 = vmatprep.subr.mxu0 0.0
    %306 = vmatpush2.msra.mxu0 %v223
    %307 = vmatprep.subr.mxu0 0.0
    %308 = vmatpush2.msra.mxu0 %v222
    %309 = vmatprep.mubr.f32.mxu0 %v205
    %310 = vmatmul.mubr.f32.gmra.mxu0 %v204
    %v311 = vpop.f32.mrf.mxu0
    %v312 = vadd.f32 %v243, %v311
    %v313 = vpop.f32.mrf.mxu0
    %314 = vdwg.mxu0
    %v315 = vmax.f32 %v312, 0.0
    %v316 = vld [vmem:[#allocation7] sm:$0xff]
    %v317 = vld [vmem:[#allocation7 + $0x8] sm:$0xff]
    %v318 = vld [vmem:[#allocation7 + $0x10] sm:$0xff]
    %v319 = vld [vmem:[#allocation7 + $0x18] sm:$0xff]
    %v320 = vld [vmem:[#allocation7 + $0x20] sm:$0xff]
    %v321 = vld [vmem:[#allocation7 + $0x28] sm:$0xff]
    %v322 = vld [vmem:[#allocation7 + $0x30] sm:$0xff]
    %v323 = vld [vmem:[#allocation7 + $0x38] sm:$0xff]
    %v324 = vld [vmem:[#allocation7 + $0x40] sm:$0xff]
    %v325 = vld [vmem:[#allocation7 + $0x48] sm:$0xff]
    %v326 = vld [vmem:[#allocation7 + $0x50] sm:$0xff]
    %v327 = vld [vmem:[#allocation7 + $0x58] sm:$0xff]
    %v328 = vld [vmem:[#allocation7 + $0x60] sm:$0xff]
    %v329 = vld [vmem:[#allocation7 + $0x68] sm:$0xff]
    %v330 = vld [vmem:[#allocation7 + $0x70] sm:$0xff]
    %v331 = vld [vmem:[#allocation7 + $0x78] sm:$0xff]
    %v332 = vld [vmem:[%s6] sm:$0x1]
    %v334 = vlaneseq
    %v335 = vshrl.u32 %v334, 7
    %v336 = vsub.s32 0, %v335
    %v337 = vrot.slane %v332, %v336
    %339 = vmatprep.subr.mxu0 0.0
    %340 = vmatpush1.msra.mxu0 %v331
    %341 = vmatprep.subr.mxu0 0.0
    %342 = vmatpush1.msra.mxu0 %v330
    %343 = vmatprep.subr.mxu0 0.0
    %344 = vmatpush1.msra.mxu0 %v329
    %345 = vmatprep.subr.mxu0 0.0
    %346 = vmatpush1.msra.mxu0 %v328
    %347 = vmatprep.subr.mxu0 0.0
    %348 = vmatpush1.msra.mxu0 %v327
    %349 = vmatprep.subr.mxu0 0.0
    %350 = vmatpush1.msra.mxu0 %v326
    %351 = vmatprep.subr.mxu0 0.0
    %352 = vmatpush1.msra.mxu0 %v325
    %353 = vmatprep.subr.mxu0 0.0
    %354 = vmatpush1.msra.mxu0 %v324
    %355 = vmatprep.subr.mxu0 0.0
    %356 = vmatpush1.msra.mxu0 %v323
    %357 = vmatprep.subr.mxu0 0.0
    %358 = vmatpush1.msra.mxu0 %v322
    %359 = vmatprep.subr.mxu0 0.0
    %360 = vmatpush1.msra.mxu0 %v321
    %361 = vmatprep.subr.mxu0 0.0
    %362 = vmatpush1.msra.mxu0 %v320
    %363 = vmatprep.subr.mxu0 0.0
    %364 = vmatpush1.msra.mxu0 %v319
    %365 = vmatprep.subr.mxu0 0.0
    %366 = vmatpush1.msra.mxu0 %v318
    %367 = vmatprep.subr.mxu0 0.0
    %368 = vmatpush1.msra.mxu0 %v317
    %369 = vmatprep.subr.mxu0 0.0
    %370 = vmatpush1.msra.mxu0 %v316
    %371 = vmatprep.subr.mxu0 0.0
    %372 = vmatpush2.msra.mxu0 0.0
    %373 = vmatprep.subr.mxu0 0.0
    %374 = vmatpush2.msra.mxu0 0.0
    %375 = vmatprep.subr.mxu0 0.0
    %376 = vmatpush2.msra.mxu0 0.0
    %377 = vmatprep.subr.mxu0 0.0
    %378 = vmatpush2.msra.mxu0 0.0
    %379 = vmatprep.subr.mxu0 0.0
    %380 = vmatpush2.msra.mxu0 0.0
    %381 = vmatprep.subr.mxu0 0.0
    %382 = vmatpush2.msra.mxu0 0.0
    %383 = vmatprep.subr.mxu0 0.0
    %384 = vmatpush2.msra.mxu0 0.0
    %385 = vmatprep.subr.mxu0 0.0
    %386 = vmatpush2.msra.mxu0 0.0
    %387 = vmatprep.subr.mxu0 0.0
    %388 = vmatpush2.msra.mxu0 0.0
    %389 = vmatprep.subr.mxu0 0.0
    %390 = vmatpush2.msra.mxu0 0.0
    %391 = vmatprep.subr.mxu0 0.0
    %392 = vmatpush2.msra.mxu0 0.0
    %393 = vmatprep.subr.mxu0 0.0
    %394 = vmatpush2.msra.mxu0 0.0
    %395 = vmatprep.subr.mxu0 0.0
    %396 = vmatpush2.msra.mxu0 0.0
    %397 = vmatprep.subr.mxu0 0.0
    %398 = vmatpush2.msra.mxu0 0.0
    %399 = vmatprep.subr.mxu0 0.0
    %400 = vmatpush2.msra.mxu0 0.0
    %401 = vmatprep.subr.mxu0 0.0
    %402 = vmatpush2.msra.mxu0 0.0
    %403 = vmatprep.mubr.f32.mxu0 0.0
    %404 = vmatmul.mubr.f32.gmra.mxu0 %v315
    %v405 = vpop.f32.mrf.mxu0
    %v406 = vadd.f32 %v337, %v405
    %v407 = vpop.f32.mrf.mxu0
    %408 = vdwg.mxu0
    %v409 = vmax.f32 %v406, 0.0
    %v410 = vld [vmem:[#allocation8] sm:$0xff]
    %v411 = vld [vmem:[#allocation8 + $0x8] sm:$0xff]
    %v412 = vld [vmem:[#allocation8 + $0x10] sm:$0xff]
    %v413 = vld [vmem:[#allocation8 + $0x18] sm:$0xff]
    %v414 = vld [vmem:[#allocation8 + $0x20] sm:$0xff]
    %v415 = vld [vmem:[#allocation8 + $0x28] sm:$0xff]
    %v416 = vld [vmem:[#allocation8 + $0x30] sm:$0xff]
    %v417 = vld [vmem:[#allocation8 + $0x38] sm:$0xff]
    %v418 = vld [vmem:[#allocation8 + $0x40] sm:$0xff]
    %v419 = vld [vmem:[#allocation8 + $0x48] sm:$0xff]
    %v420 = vld [vmem:[#allocation8 + $0x50] sm:$0xff]
    %v421 = vld [vmem:[#allocation8 + $0x58] sm:$0xff]
    %v422 = vld [vmem:[#allocation8 + $0x60] sm:$0xff]
    %v423 = vld [vmem:[#allocation8 + $0x68] sm:$0xff]
    %v424 = vld [vmem:[#allocation8 + $0x70] sm:$0xff]
    %v425 = vld [vmem:[#allocation8 + $0x78] sm:$0xff]
    %v426 = vld [vmem:[%s8] sm:$0x1]
    %v428 = vlaneseq
    %v429 = vshrl.u32 %v428, 7
    %v430 = vsub.s32 0, %v429
    %v431 = vrot.slane %v426, %v430
    %433 = vmatprep.subr.mxu0 0.0
    %434 = vmatpush1.msra.mxu0 %v425
    %435 = vmatprep.subr.mxu0 0.0
    %436 = vmatpush1.msra.mxu0 %v424
    %437 = vmatprep.subr.mxu0 0.0
    %438 = vmatpush1.msra.mxu0 %v423
    %439 = vmatprep.subr.mxu0 0.0
    %440 = vmatpush1.msra.mxu0 %v422
    %441 = vmatprep.subr.mxu0 0.0
    %442 = vmatpush1.msra.mxu0 %v421
    %443 = vmatprep.subr.mxu0 0.0
    %444 = vmatpush1.msra.mxu0 %v420
    %445 = vmatprep.subr.mxu0 0.0
    %446 = vmatpush1.msra.mxu0 %v419
    %447 = vmatprep.subr.mxu0 0.0
    %448 = vmatpush1.msra.mxu0 %v418
    %449 = vmatprep.subr.mxu0 0.0
    %450 = vmatpush1.msra.mxu0 %v417
    %451 = vmatprep.subr.mxu0 0.0
    %452 = vmatpush1.msra.mxu0 %v416
    %453 = vmatprep.subr.mxu0 0.0
    %454 = vmatpush1.msra.mxu0 %v415
    %455 = vmatprep.subr.mxu0 0.0
    %456 = vmatpush1.msra.mxu0 %v414
    %457 = vmatprep.subr.mxu0 0.0
    %458 = vmatpush1.msra.mxu0 %v413
    %459 = vmatprep.subr.mxu0 0.0
    %460 = vmatpush1.msra.mxu0 %v412
    %461 = vmatprep.subr.mxu0 0.0
    %462 = vmatpush1.msra.mxu0 %v411
    %463 = vmatprep.subr.mxu0 0.0
    %464 = vmatpush1.msra.mxu0 %v410
    %465 = vmatprep.subr.mxu0 0.0
    %466 = vmatpush2.msra.mxu0 0.0
    %467 = vmatprep.subr.mxu0 0.0
    %468 = vmatpush2.msra.mxu0 0.0
    %469 = vmatprep.subr.mxu0 0.0
    %470 = vmatpush2.msra.mxu0 0.0
    %471 = vmatprep.subr.mxu0 0.0
    %472 = vmatpush2.msra.mxu0 0.0
    %473 = vmatprep.subr.mxu0 0.0
    %474 = vmatpush2.msra.mxu0 0.0
    %475 = vmatprep.subr.mxu0 0.0
    %476 = vmatpush2.msra.mxu0 0.0
    %477 = vmatprep.subr.mxu0 0.0
    %478 = vmatpush2.msra.mxu0 0.0
    %479 = vmatprep.subr.mxu0 0.0
    %480 = vmatpush2.msra.mxu0 0.0
    %481 = vmatprep.subr.mxu0 0.0
    %482 = vmatpush2.msra.mxu0 0.0
    %483 = vmatprep.subr.mxu0 0.0
    %484 = vmatpush2.msra.mxu0 0.0
    %485 = vmatprep.subr.mxu0 0.0
    %486 = vmatpush2.msra.mxu0 0.0
    %487 = vmatprep.subr.mxu0 0.0
    %488 = vmatpush2.msra.mxu0 0.0
    %489 = vmatprep.subr.mxu0 0.0
    %490 = vmatpush2.msra.mxu0 0.0
    %491 = vmatprep.subr.mxu0 0.0
    %492 = vmatpush2.msra.mxu0 0.0
    %493 = vmatprep.subr.mxu0 0.0
    %494 = vmatpush2.msra.mxu0 0.0
    %495 = vmatprep.subr.mxu0 0.0
    %496 = vmatpush2.msra.mxu0 0.0
    %497 = vmatprep.mubr.f32.mxu0 0.0
    %498 = vmatmul.mubr.f32.gmra.mxu0 %v409
    %v499 = vpop.f32.mrf.mxu0
    %v500 = vadd.f32 %v431, %v499
    %v501 = vpop.f32.mrf.mxu0
    %502 = vdwg.mxu0
    %503 = vst [vmem:[#allocation10] sm:$0xff] %v500
    // Predicated region
    $region54: #{mlp_forward.1} parent=1 // pred_check
      _
    $region55: #{mlp_forward.1} parent=1 // pred_check_branch
      %505 = sbr.rel (0) target = $region57
    $region56: #{mlp_forward.1} parent=1 // pred_region
      %s507 = ssub.s32 128, 128
      %508 = vsyncadd [#allocation4], %s507
      %s510 = sshll.u32 [#allocation10], 4
      %s511 = int_to_ptr.vmem [resolvable:$true] %s510
      %513 = dma.vmem_to_hbm [thread:$0]  %s511, 128, %s9, [#allocation4]
    $region57: #{mlp_forward.1} parent=1 // pred_fallthru
      _
    // Predicated region
    $region58: #{mlp_forward.1} parent=1 // pred_check
      _
    $region59: #{mlp_forward.1} parent=1 // pred_check_branch
      %515 = sbr.rel (0) target = $region61
    $region60: #{mlp_forward.1} parent=1 // pred_region
      %516 = dma.done [#allocation4], 128
    $region61: #{mlp_forward.1} parent=1 // pred_fallthru
      _
    %517 = vsyncpa [#allocation3], 1
    %518 = vsyncpa [#allocation6], 1
    %519 = vsyncpa [#allocation9], 1
    %520 = vsyncpa [#allocation4], 1

</llo_original>
